<compile_context>
chip_gen: v5e
topology: v5e:2x2
jax: 0.10.0
libtpu: 0.0.40
codegen_flags: <defaults>
</compile_context>

<pallas_src>
import functools
import math

import jax
import jax.numpy as jnp
from jax import lax
from jax.experimental import pallas as pl
from jax.experimental.pallas import tpu as pltpu

BN_EPS = 1e-5


def relation_network_kernel(x_ref, w1_ref, w2_ref, pk1_ref, pk2_ref, o_ref,
                            s1_sum, s1_sq, s2_sum, s2_sq,
                            bn1_scale, bn1_shift, bn2_scale, bn2_shift,
                            *, n_valid, tile_n, mask_tail, compute_dtype):
    p = pl.program_id(0)      # 0: layer-1 stats, 1: layer-2 stats, 2: normalize+output
    t = pl.program_id(1)      # batch (lane) tile

    pk1 = pk1_ref[...].astype(jnp.float32)     # (r1, 3): b1 | gamma1 | beta1
    pk2 = pk2_ref[...].astype(jnp.float32)     # (r2, 5): b2 | gamma2 | beta2 | w3 | b3
    b1, g1, be1 = pk1[:, 0:1], pk1[:, 1:2], pk1[:, 2:3]
    b2, g2, be2 = pk2[:, 0:1], pk2[:, 1:2], pk2[:, 2:3]
    w3c = pk2[:, 3:4]                           # (r2, 1)
    b3 = pk2[0:1, 4:5]                          # (1, 1)

    inv_n = 1.0 / float(n_valid)                # static true batch size

    def masked(h):
        # Exclude padded tail lanes from the batch statistics (static no-op when
        # N is already a multiple of the tile width).
        if not mask_tail:
            return h
        lane = lax.broadcasted_iota(jnp.int32, (1, tile_n), 1)
        validf = ((t * tile_n + lane) < n_valid).astype(jnp.float32)
        return h * validf

    def compute_h1():
        # x stays in natural (tile_n, d_in) layout; contract over its LAST dim so
        # the result lands directly in the transposed, lane-dense (r1, tile_n)
        # layout (no HBM transpose, no in-kernel relayout of the big operand).
        x = x_ref[...].astype(compute_dtype)
        h1 = lax.dot_general(w1_ref[...].astype(compute_dtype), x,
                             dimension_numbers=(((1,), (1,)), ((), ())),
                             preferred_element_type=jnp.float32)
        return h1 + b1                                           # (r1, tile_n)

    def compute_a1():
        return jnp.maximum(compute_h1() * bn1_scale[...] + bn1_shift[...], 0.0)

    def compute_h2(a1):
        return jnp.dot(w2_ref[...].astype(compute_dtype), a1.astype(compute_dtype),
                       preferred_element_type=jnp.float32) + b2  # (r2, tile_n)

    def finalize(sum_ref, sq_ref, g, be, scale_ref, shift_ref):
        # Single cross-lane (XLU) reduce per layer; per-tile loop stays MXU/VPU only.
        mu = jnp.sum(sum_ref[...], axis=1, keepdims=True) * inv_n
        msq = jnp.sum(sq_ref[...], axis=1, keepdims=True) * inv_n
        # Single-accumulation-pass variance (E[h^2]-mu^2), clamped >= 0. Matches the
        # biased train-mode BatchNorm variance; all accumulation is f32.
        var = jnp.maximum(msq - mu * mu, 0.0)
        scale = g * lax.rsqrt(var + BN_EPS)
        scale_ref[...] = scale
        shift_ref[...] = be - mu * scale

    # ---- pass 0: accumulate layer-1 batch statistics -------------------------
    @pl.when(p == 0)
    def _():
        @pl.when(t == 0)
        def _():
            s1_sum[...] = jnp.zeros_like(s1_sum)
            s1_sq[...] = jnp.zeros_like(s1_sq)

        h1m = masked(compute_h1())
        s1_sum[...] += h1m
        s1_sq[...] += h1m * h1m

    # ---- pass 1: finalize BN1, accumulate layer-2 batch statistics -----------
    @pl.when(p == 1)
    def _():
        @pl.when(t == 0)
        def _():
            finalize(s1_sum, s1_sq, g1, be1, bn1_scale, bn1_shift)
            s2_sum[...] = jnp.zeros_like(s2_sum)
            s2_sq[...] = jnp.zeros_like(s2_sq)

        h2m = masked(compute_h2(compute_a1()))
        s2_sum[...] += h2m
        s2_sq[...] += h2m * h2m

    # ---- pass 2: finalize BN2, normalize, layer 3, sigmoid, write output -----
    @pl.when(p == 2)
    def _():
        @pl.when(t == 0)
        def _():
            finalize(s2_sum, s2_sq, g2, be2, bn2_scale, bn2_shift)

        a1 = compute_a1()
        h2 = compute_h2(a1)
        a2 = jnp.maximum(h2 * bn2_scale[...] + bn2_shift[...], 0.0)
        # Layer 3 as VPU multiply + sublane (XLU) reduce; MXU is idle here anyway.
        # (Swap back to a (1,r2)@(r2,tile_n) dot only if the bundle shows VALU
        #  saturation at large N.)
        h3 = jnp.sum(a2 * w3c, axis=0, keepdims=True) + b3        # (1, tile_n)
        # Sigmoid: exp on EUP + exact EUP reciprocal (no VPU divide).
        o_ref[...] = pl.reciprocal(1.0 + jnp.exp(-h3), approx=False)


def relation_network_forward(x, params, *, tile_n=512, compute_dtype=jnp.float32,
                             vmem_limit_bytes=32 * 1024 * 1024):
    """x: (N, 2*embedding_third). Returns (N, 1) float32.

    On v6e/v7x pass compute_dtype=jnp.bfloat16: x is cast to bf16 BEFORE the DMA
    (halves the dominant HBM read); weights stay f32 in HBM and are cast in-kernel.
    BN statistics / ReLU / sigmoid always run in f32.
    """
    n, d_in = x.shape
    w1, w2, w3 = params["w1"], params["w2"], params["w3"]
    r1, r2 = w1.shape[0], w2.shape[0]
    assert tile_n % 128 == 0, "tile_n must be a multiple of 128 lanes"

    # Pack the nine tiny per-feature parameter vectors into two column blocks
    # (5 input DMAs instead of 11 padded tiles).
    pk1 = jnp.stack([params["b1"], params["g1"], params["be1"]], axis=1)      # (r1, 3)
    b3_col = jnp.zeros((r2,), jnp.float32).at[0].set(params["b3"][0])
    pk2 = jnp.stack([params["b2"], params["g2"], params["be2"], w3[0], b3_col],
                    axis=1)                                                   # (r2, 5)

    # Cast the big operand before the DMA (bf16 path), keep everything else f32.
    if x.dtype != compute_dtype:
        x = x.astype(compute_dtype)

    # Lane-dense batch tiling: pad N up to a multiple of the tile width; padded
    # lanes are masked out of the BN statistics inside the kernel.
    tile = min(tile_n, 128 * pl.cdiv(n, 128))
    num_tiles = pl.cdiv(n, tile)
    n_pad = num_tiles * tile
    if n_pad != n:
        x = jnp.pad(x, ((0, n_pad - n), (0, 0)))

    kernel = functools.partial(
        relation_network_kernel,
        n_valid=n, tile_n=tile, mask_tail=(n_pad != n), compute_dtype=compute_dtype)

    # Honest cost estimate: layer-1 matmul runs in all 3 passes, layer-2 in 2,
    # x is read 3x from HBM (recompute-instead-of-stash design).
    flops = n_pad * (3 * 2 * d_in * r1 + 2 * 2 * r1 * r2 + 2 * r2 + 10 * (r1 + r2))
    bytes_accessed = (3 * x.size * x.dtype.itemsize + 4 * n_pad
                      + 4 * (w1.size + w2.size + pk1.size + pk2.size))
    cost = pl.CostEstimate(flops=flops, transcendentals=n_pad,
                           bytes_accessed=bytes_accessed)

    grid_spec = pltpu.PrefetchScalarGridSpec(
        num_scalar_prefetch=0,
        grid=(3, num_tiles),                                   # (pass, batch tile)
        in_specs=[
            pl.BlockSpec((tile, d_in), lambda p, t: (t, 0)),   # x, natural layout
            pl.BlockSpec((r1, d_in), lambda p, t: (0, 0)),     # w1 (resident)
            pl.BlockSpec((r2, r1), lambda p, t: (0, 0)),       # w2 (resident)
            pl.BlockSpec((r1, 3), lambda p, t: (0, 0)),        # packed b1|g1|be1
            pl.BlockSpec((r2, 5), lambda p, t: (0, 0)),        # packed b2|g2|be2|w3|b3
        ],
        out_specs=pl.BlockSpec((1, tile), lambda p, t: (0, t)),   # lane-dense output
        scratch_shapes=[
            pltpu.VMEM((r1, tile), jnp.float32),   # sum(h1)   (full-lane partials)
            pltpu.VMEM((r1, tile), jnp.float32),   # sum(h1^2)
            pltpu.VMEM((r2, tile), jnp.float32),   # sum(h2)
            pltpu.VMEM((r2, tile), jnp.float32),   # sum(h2^2)
            pltpu.VMEM((r1, 1), jnp.float32),      # BN1 scale
            pltpu.VMEM((r1, 1), jnp.float32),      # BN1 shift
            pltpu.VMEM((r2, 1), jnp.float32),      # BN2 scale
            pltpu.VMEM((r2, 1), jnp.float32),      # BN2 shift
        ],
    )

    out_t = pl.pallas_call(
        kernel,
        out_shape=jax.ShapeDtypeStruct((1, n_pad), jnp.float32),
        grid_spec=grid_spec,
        compiler_params=pltpu.CompilerParams(
            dimension_semantics=("arbitrary", "arbitrary"),
            vmem_limit_bytes=vmem_limit_bytes),
        cost_estimate=cost,
    )(x, w1, w2, pk1, pk2)

    # Cheap tail-slice + (1,n)->(n,1) reshape to match the module's output shape.
    return out_t[0, :n].reshape(n, 1)


def init_params(key, embedding_third, relation_first, relation_second):
    """Parameters in PyTorch layout: Linear weight (out, in), bias (out,)."""
    d_in = embedding_third * 2
    k1, k2, k3, k4, k5, k6 = jax.random.split(key, 6)

    def lin(kw, kb, fan_in, fan_out):
        bound = 1.0 / math.sqrt(fan_in)
        w = jax.random.uniform(kw, (fan_out, fan_in), jnp.float32, -bound, bound)
        b = jax.random.uniform(kb, (fan_out,), jnp.float32, -bound, bound)
        return w, b

    w1, b1 = lin(k1, k2, d_in, relation_first)
    w2, b2 = lin(k3, k4, relation_first, relation_second)
    w3, b3 = lin(k5, k6, relation_second, 1)
    return {
        "w1": w1, "b1": b1,
        "g1": jnp.ones((relation_first,), jnp.float32),
        "be1": jnp.zeros((relation_first,), jnp.float32),
        "w2": w2, "b2": b2,
        "g2": jnp.ones((relation_second,), jnp.float32),
        "be2": jnp.zeros((relation_second,), jnp.float32),
        "w3": w3, "b3": b3,
    }


def reference_forward(x, p):
    """Pure-JAX reference of the PyTorch forward (train-mode BatchNorm1d)."""
    def bn_relu(h, g, b):
        mu = jnp.mean(h, axis=0, keepdims=True)
        var = jnp.mean((h - mu) ** 2, axis=0, keepdims=True)
        return jnp.maximum((h - mu) / jnp.sqrt(var + BN_EPS) * g + b, 0.0)

    h = bn_relu(x @ p["w1"].T + p["b1"], p["g1"], p["be1"])
    h = bn_relu(h @ p["w2"].T + p["b2"], p["g2"], p["be2"])
    return jax.nn.sigmoid(h @ p["w3"].T + p["b3"])


if __name__ == "__main__":
    embedding_third, relation_first, relation_second = 32, 32, 16

    key = jax.random.PRNGKey(0)
    kx1, kx2, kp = jax.random.split(key, 3)
    params = init_params(kp, embedding_third, relation_first, relation_second)

    # Test 1: small batch (single tile; heavy lane padding masked out of BN stats).
    x1 = jax.random.normal(kx1, (8, embedding_third * 2), jnp.float32)
    out1 = jax.block_until_ready(relation_network_forward(x1, params))
    ref1 = reference_forward(x1, params)
    assert out1.shape == (8, 1), out1.shape
    assert jnp.allclose(out1, ref1, atol=5e-5, rtol=5e-5), (
        float(jnp.max(jnp.abs(out1 - ref1))))

    # Test 2: multi-tile ragged batch (cross-tile stat accumulation + tail mask).
    x2 = jax.random.normal(kx2, (300, embedding_third * 2), jnp.float32)
    out2 = jax.block_until_ready(relation_network_forward(x2, params, tile_n=128))
    ref2 = reference_forward(x2, params)
    assert out2.shape == (300, 1), out2.shape
    assert jnp.allclose(out2, ref2, atol=5e-5, rtol=5e-5), (
        float(jnp.max(jnp.abs(out2 - ref2))))

    print("KERNEL_OK")
</pallas_src>

<mosaic_0001>
module attributes {stable_mosaic.version = 11 : i64} {
  func.func @relation_network_kernel(%arg0: i32, %arg1: i32, %arg2: memref<128x64xf32, #tpu.memory_space<vmem>>, %arg3: memref<32x64xf32, #tpu.memory_space<vmem>>, %arg4: memref<16x32xf32, #tpu.memory_space<vmem>>, %arg5: memref<32x3xf32, #tpu.memory_space<vmem>>, %arg6: memref<16x5xf32, #tpu.memory_space<vmem>>, %arg7: memref<1x128xf32, #tpu.memory_space<vmem>>, %arg8: memref<32x128xf32, #tpu.memory_space<vmem>>, %arg9: memref<32x128xf32, #tpu.memory_space<vmem>>, %arg10: memref<16x128xf32, #tpu.memory_space<vmem>>, %arg11: memref<16x128xf32, #tpu.memory_space<vmem>>, %arg12: memref<32x1xf32, #tpu.memory_space<vmem>>, %arg13: memref<32x1xf32, #tpu.memory_space<vmem>>, %arg14: memref<16x1xf32, #tpu.memory_space<vmem>>, %arg15: memref<16x1xf32, #tpu.memory_space<vmem>>) attributes {dimension_semantics = [#tpu.dimension_semantics<arbitrary>, #tpu.dimension_semantics<arbitrary>], iteration_bounds = array<i64: 3, 1>, scalar_prefetch = 0 : i64, scratch_operands = 8 : i64, tpu.core_type = #tpu.core_type<tc>, window_params = [{transform_indices = @transform_0, window_bounds = array<i64: 128, 64>}, {pipeline_mode = #tpu.pipeline_mode<synchronous>, transform_indices = @transform_1, window_bounds = array<i64: 32, 64>}, {pipeline_mode = #tpu.pipeline_mode<synchronous>, transform_indices = @transform_2, window_bounds = array<i64: 16, 32>}, {pipeline_mode = #tpu.pipeline_mode<synchronous>, transform_indices = @transform_3, window_bounds = array<i64: 32, 3>}, {pipeline_mode = #tpu.pipeline_mode<synchronous>, transform_indices = @transform_4, window_bounds = array<i64: 16, 5>}, {transform_indices = @transform_5, window_bounds = array<i64: 1, 128>}]} {
    %c0 = arith.constant 0 : index
    %c0_0 = arith.constant 0 : index
    %0 = vector.load %arg5[%c0, %c0_0] : memref<32x3xf32, #tpu.memory_space<vmem>>, vector<32x3xf32>
    %c0_1 = arith.constant 0 : index
    %c0_2 = arith.constant 0 : index
    %1 = vector.load %arg6[%c0_1, %c0_2] : memref<16x5xf32, #tpu.memory_space<vmem>>, vector<16x5xf32>
    %2 = vector.extract_strided_slice %0 {offsets = [0, 0], sizes = [32, 1], strides = [1, 1]} : vector<32x3xf32> to vector<32x1xf32>
    %3 = vector.extract_strided_slice %0 {offsets = [0, 1], sizes = [32, 1], strides = [1, 1]} : vector<32x3xf32> to vector<32x1xf32>
    %4 = vector.extract_strided_slice %0 {offsets = [0, 2], sizes = [32, 1], strides = [1, 1]} : vector<32x3xf32> to vector<32x1xf32>
    %5 = vector.extract_strided_slice %1 {offsets = [0, 0], sizes = [16, 1], strides = [1, 1]} : vector<16x5xf32> to vector<16x1xf32>
    %6 = vector.extract_strided_slice %1 {offsets = [0, 1], sizes = [16, 1], strides = [1, 1]} : vector<16x5xf32> to vector<16x1xf32>
    %7 = vector.extract_strided_slice %1 {offsets = [0, 2], sizes = [16, 1], strides = [1, 1]} : vector<16x5xf32> to vector<16x1xf32>
    %8 = vector.extract_strided_slice %1 {offsets = [0, 3], sizes = [16, 1], strides = [1, 1]} : vector<16x5xf32> to vector<16x1xf32>
    %9 = vector.extract_strided_slice %1 {offsets = [0, 4], sizes = [1, 1], strides = [1, 1]} : vector<16x5xf32> to vector<1x1xf32>
    %c0_i32 = arith.constant 0 : i32
    %10 = arith.cmpi eq, %arg0, %c0_i32 : i32
    %11 = arith.extui %10 : i1 to i32
    %c0_i32_3 = arith.constant 0 : i32
    %12 = arith.cmpi ne, %11, %c0_i32_3 : i32
    scf.if %12 {
      %c0_i32_6 = arith.constant 0 : i32
      %19 = arith.cmpi eq, %arg1, %c0_i32_6 : i32
      %20 = arith.extui %19 : i1 to i32
      %c0_i32_7 = arith.constant 0 : i32
      %21 = arith.cmpi ne, %20, %c0_i32_7 : i32
      scf.if %21 {
        %cst_20 = arith.constant 0.000000e+00 : f32
        %44 = vector.broadcast %cst_20 : f32 to vector<32x128xf32>
        %c0_21 = arith.constant 0 : index
        %c0_22 = arith.constant 0 : index
        %45 = vector.load %arg8[%c0_21, %c0_22] : memref<32x128xf32, #tpu.memory_space<vmem>>, vector<32x128xf32>
        tpu.vector_store %arg8[%c0_21, %c0_22], %44 {strides = array<i32>} : memref<32x128xf32, #tpu.memory_space<vmem>>, vector<32x128xf32>,
        %cst_23 = arith.constant 0.000000e+00 : f32
        %46 = vector.broadcast %cst_23 : f32 to vector<32x128xf32>
        %c0_24 = arith.constant 0 : index
        %c0_25 = arith.constant 0 : index
        %47 = vector.load %arg9[%c0_24, %c0_25] : memref<32x128xf32, #tpu.memory_space<vmem>>, vector<32x128xf32>
        tpu.vector_store %arg9[%c0_24, %c0_25], %46 {strides = array<i32>} : memref<32x128xf32, #tpu.memory_space<vmem>>, vector<32x128xf32>,
      } else {
      }
      %c0_8 = arith.constant 0 : index
      %c0_9 = arith.constant 0 : index
      %22 = vector.load %arg2[%c0_8, %c0_9] : memref<128x64xf32, #tpu.memory_space<vmem>>, vector<128x64xf32>
      %c0_10 = arith.constant 0 : index
      %c0_11 = arith.constant 0 : index
      %23 = vector.load %arg3[%c0_10, %c0_11] : memref<32x64xf32, #tpu.memory_space<vmem>>, vector<32x64xf32>
      %cst = arith.constant dense<0.000000e+00> : vector<32x128xf32>
      %24 = tpu.matmul %23, %22, %cst {dimension_numbers = #tpu.dot_dimension_numbers<[1], [1], [0], [0], [0, 0, 1, 0], [], []>} : vector<32x64xf32>, vector<128x64xf32>, vector<32x128xf32> -> vector<32x128xf32>
      %25 = vector.broadcast %2 : vector<32x1xf32> to vector<32x128xf32>
      %26 = arith.addf %24, %25 : vector<32x128xf32>
      %27 = tpu.iota {dimensions = array<i32: 1>} : vector<1x128xi32>
      %c128_i32 = arith.constant 128 : i32
      %28 = arith.muli %arg1, %c128_i32 : i32
      %29 = vector.broadcast %28 : i32 to vector<1x128xi32>
      %30 = arith.addi %29, %27 : vector<1x128xi32>
      %c8_i32 = arith.constant 8 : i32
      %31 = vector.broadcast %c8_i32 : i32 to vector<1x128xi32>
      %32 = arith.cmpi slt, %30, %31 : vector<1x128xi32>
      %33 = arith.extui %32 : vector<1x128xi1> to vector<1x128xi32>
      %34 = arith.sitofp %33 : vector<1x128xi32> to vector<1x128xf32>
      %35 = vector.broadcast %34 : vector<1x128xf32> to vector<32x128xf32>
      %36 = arith.mulf %26, %35 : vector<32x128xf32>
      %c0_12 = arith.constant 0 : index
      %c0_13 = arith.constant 0 : index
      %37 = vector.load %arg8[%c0_12, %c0_13] : memref<32x128xf32, #tpu.memory_space<vmem>>, vector<32x128xf32>
      %38 = arith.addf %37, %36 : vector<32x128xf32>
      %c0_14 = arith.constant 0 : index
      %c0_15 = arith.constant 0 : index
      %39 = vector.load %arg8[%c0_14, %c0_15] : memref<32x128xf32, #tpu.memory_space<vmem>>, vector<32x128xf32>
      tpu.vector_store %arg8[%c0_14, %c0_15], %38 {strides = array<i32>} : memref<32x128xf32, #tpu.memory_space<vmem>>, vector<32x128xf32>,
      %c0_16 = arith.constant 0 : index
      %c0_17 = arith.constant 0 : index
      %40 = vector.load %arg9[%c0_16, %c0_17] : memref<32x128xf32, #tpu.memory_space<vmem>>, vector<32x128xf32>
      %41 = arith.mulf %36, %36 : vector<32x128xf32>
      %42 = arith.addf %40, %41 : vector<32x128xf32>
      %c0_18 = arith.constant 0 : index
      %c0_19 = arith.constant 0 : index
      %43 = vector.load %arg9[%c0_18, %c0_19] : memref<32x128xf32, #tpu.memory_space<vmem>>, vector<32x128xf32>
      tpu.vector_store %arg9[%c0_18, %c0_19], %42 {strides = array<i32>} : memref<32x128xf32, #tpu.memory_space<vmem>>, vector<32x128xf32>,
    } else {
    }
    %c1_i32 = arith.constant 1 : i32
    %13 = arith.cmpi eq, %arg0, %c1_i32 : i32
    %14 = arith.extui %13 : i1 to i32
    %c0_i32_4 = arith.constant 0 : i32
    %15 = arith.cmpi ne, %14, %c0_i32_4 : i32
    scf.if %15 {
      %c0_i32_6 = arith.constant 0 : i32
      %19 = arith.cmpi eq, %arg1, %c0_i32_6 : i32
      %20 = arith.extui %19 : i1 to i32
      %c0_i32_7 = arith.constant 0 : i32
      %21 = arith.cmpi ne, %20, %c0_i32_7 : i32
      scf.if %21 {
        %c0_28 = arith.constant 0 : index
        %c0_29 = arith.constant 0 : index
        %56 = vector.load %arg8[%c0_28, %c0_29] : memref<32x128xf32, #tpu.memory_space<vmem>>, vector<32x128xf32>
        %cst_30 = arith.constant dense<0.000000e+00> : vector<32xf32>
        %57 = vector.multi_reduction <add>, %56, %cst_30 [1] : vector<32x128xf32> to vector<32xf32>
        %58 = vector.shape_cast %57 : vector<32xf32> to vector<32x1xf32>
        %cst_31 = arith.constant 1.250000e-01 : f32
        %59 = vector.broadcast %cst_31 : f32 to vector<32x1xf32>
        %60 = arith.mulf %58, %59 : vector<32x1xf32>
        %c0_32 = arith.constant 0 : index
        %c0_33 = arith.constant 0 : index
        %61 = vector.load %arg9[%c0_32, %c0_33] : memref<32x128xf32, #tpu.memory_space<vmem>>, vector<32x128xf32>
        %cst_34 = arith.constant dense<0.000000e+00> : vector<32xf32>
        %62 = vector.multi_reduction <add>, %61, %cst_34 [1] : vector<32x128xf32> to vector<32xf32>
        %63 = vector.shape_cast %62 : vector<32xf32> to vector<32x1xf32>
        %cst_35 = arith.constant 1.250000e-01 : f32
        %64 = vector.broadcast %cst_35 : f32 to vector<32x1xf32>
        %65 = arith.mulf %63, %64 : vector<32x1xf32>
        %66 = arith.mulf %60, %60 : vector<32x1xf32>
        %67 = arith.subf %65, %66 : vector<32x1xf32>
        %cst_36 = arith.constant 0.000000e+00 : f32
        %68 = vector.broadcast %cst_36 : f32 to vector<32x1xf32>
        %69 = arith.maximumf %67, %68 : vector<32x1xf32>
        %cst_37 = arith.constant 9.99999974E-6 : f32
        %70 = vector.broadcast %cst_37 : f32 to vector<32x1xf32>
        %71 = arith.addf %69, %70 : vector<32x1xf32>
        %72 = math.rsqrt %71 : vector<32x1xf32>
        %73 = arith.mulf %3, %72 : vector<32x1xf32>
        %c0_38 = arith.constant 0 : index
        %c0_39 = arith.constant 0 : index
        %74 = vector.load %arg12[%c0_38, %c0_39] : memref<32x1xf32, #tpu.memory_space<vmem>>, vector<32x1xf32>
        tpu.vector_store %arg12[%c0_38, %c0_39], %73 {strides = array<i32>} : memref<32x1xf32, #tpu.memory_space<vmem>>, vector<32x1xf32>,
        %75 = arith.mulf %60, %73 : vector<32x1xf32>
        %76 = arith.subf %4, %75 : vector<32x1xf32>
        %c0_40 = arith.constant 0 : index
        %c0_41 = arith.constant 0 : index
        %77 = vector.load %arg13[%c0_40, %c0_41] : memref<32x1xf32, #tpu.memory_space<vmem>>, vector<32x1xf32>
        tpu.vector_store %arg13[%c0_40, %c0_41], %76 {strides = array<i32>} : memref<32x1xf32, #tpu.memory_space<vmem>>, vector<32x1xf32>,
        %cst_42 = arith.constant 0.000000e+00 : f32
        %78 = vector.broadcast %cst_42 : f32 to vector<16x128xf32>
        %c0_43 = arith.constant 0 : index
        %c0_44 = arith.constant 0 : index
        %79 = vector.load %arg10[%c0_43, %c0_44] : memref<16x128xf32, #tpu.memory_space<vmem>>, vector<16x128xf32>
        tpu.vector_store %arg10[%c0_43, %c0_44], %78 {strides = array<i32>} : memref<16x128xf32, #tpu.memory_space<vmem>>, vector<16x128xf32>,
        %cst_45 = arith.constant 0.000000e+00 : f32
        %80 = vector.broadcast %cst_45 : f32 to vector<16x128xf32>
        %c0_46 = arith.constant 0 : index
        %c0_47 = arith.constant 0 : index
        %81 = vector.load %arg11[%c0_46, %c0_47] : memref<16x128xf32, #tpu.memory_space<vmem>>, vector<16x128xf32>
        tpu.vector_store %arg11[%c0_46, %c0_47], %80 {strides = array<i32>} : memref<16x128xf32, #tpu.memory_space<vmem>>, vector<16x128xf32>,
      } else {
      }
      %c0_8 = arith.constant 0 : index
      %c0_9 = arith.constant 0 : index
      %22 = vector.load %arg2[%c0_8, %c0_9] : memref<128x64xf32, #tpu.memory_space<vmem>>, vector<128x64xf32>
      %c0_10 = arith.constant 0 : index
      %c0_11 = arith.constant 0 : index
      %23 = vector.load %arg3[%c0_10, %c0_11] : memref<32x64xf32, #tpu.memory_space<vmem>>, vector<32x64xf32>
      %cst = arith.constant dense<0.000000e+00> : vector<32x128xf32>
      %24 = tpu.matmul %23, %22, %cst {dimension_numbers = #tpu.dot_dimension_numbers<[1], [1], [0], [0], [0, 0, 1, 0], [], []>} : vector<32x64xf32>, vector<128x64xf32>, vector<32x128xf32> -> vector<32x128xf32>
      %25 = vector.broadcast %2 : vector<32x1xf32> to vector<32x128xf32>
      %26 = arith.addf %24, %25 : vector<32x128xf32>
      %c0_12 = arith.constant 0 : index
      %c0_13 = arith.constant 0 : index
      %27 = vector.load %arg12[%c0_12, %c0_13] : memref<32x1xf32, #tpu.memory_space<vmem>>, vector<32x1xf32>
      %28 = vector.broadcast %27 : vector<32x1xf32> to vector<32x128xf32>
      %29 = arith.mulf %26, %28 : vector<32x128xf32>
      %c0_14 = arith.constant 0 : index
      %c0_15 = arith.constant 0 : index
      %30 = vector.load %arg13[%c0_14, %c0_15] : memref<32x1xf32, #tpu.memory_space<vmem>>, vector<32x1xf32>
      %31 = vector.broadcast %30 : vector<32x1xf32> to vector<32x128xf32>
      %32 = arith.addf %29, %31 : vector<32x128xf32>
      %cst_16 = arith.constant 0.000000e+00 : f32
      %33 = vector.broadcast %cst_16 : f32 to vector<32x128xf32>
      %34 = arith.maximumf %32, %33 : vector<32x128xf32>
      %c0_17 = arith.constant 0 : index
      %c0_18 = arith.constant 0 : index
      %35 = vector.load %arg4[%c0_17, %c0_18] : memref<16x32xf32, #tpu.memory_space<vmem>>, vector<16x32xf32>
      %cst_19 = arith.constant dense<0.000000e+00> : vector<16x128xf32>
      %36 = tpu.matmul %35, %34, %cst_19 {dimension_numbers = #tpu.dot_dimension_numbers<[1], [0], [0], [1], [0, 0, 1, 1], [], []>} : vector<16x32xf32>, vector<32x128xf32>, vector<16x128xf32> -> vector<16x128xf32>
      %37 = vector.broadcast %5 : vector<16x1xf32> to vector<16x128xf32>
      %38 = arith.addf %36, %37 : vector<16x128xf32>
      %39 = tpu.iota {dimensions = array<i32: 1>} : vector<1x128xi32>
      %c128_i32 = arith.constant 128 : i32
      %40 = arith.muli %arg1, %c128_i32 : i32
      %41 = vector.broadcast %40 : i32 to vector<1x128xi32>
      %42 = arith.addi %41, %39 : vector<1x128xi32>
      %c8_i32 = arith.constant 8 : i32
      %43 = vector.broadcast %c8_i32 : i32 to vector<1x128xi32>
      %44 = arith.cmpi slt, %42, %43 : vector<1x128xi32>
      %45 = arith.extui %44 : vector<1x128xi1> to vector<1x128xi32>
      %46 = arith.sitofp %45 : vector<1x128xi32> to vector<1x128xf32>
      %47 = vector.broadcast %46 : vector<1x128xf32> to vector<16x128xf32>
      %48 = arith.mulf %38, %47 : vector<16x128xf32>
      %c0_20 = arith.constant 0 : index
      %c0_21 = arith.constant 0 : index
      %49 = vector.load %arg10[%c0_20, %c0_21] : memref<16x128xf32, #tpu.memory_space<vmem>>, vector<16x128xf32>
      %50 = arith.addf %49, %48 : vector<16x128xf32>
      %c0_22 = arith.constant 0 : index
      %c0_23 = arith.constant 0 : index
      %51 = vector.load %arg10[%c0_22, %c0_23] : memref<16x128xf32, #tpu.memory_space<vmem>>, vector<16x128xf32>
      tpu.vector_store %arg10[%c0_22, %c0_23], %50 {strides = array<i32>} : memref<16x128xf32, #tpu.memory_space<vmem>>, vector<16x128xf32>,
      %c0_24 = arith.constant 0 : index
      %c0_25 = arith.constant 0 : index
      %52 = vector.load %arg11[%c0_24, %c0_25] : memref<16x128xf32, #tpu.memory_space<vmem>>, vector<16x128xf32>
      %53 = arith.mulf %48, %48 : vector<16x128xf32>
      %54 = arith.addf %52, %53 : vector<16x128xf32>
      %c0_26 = arith.constant 0 : index
      %c0_27 = arith.constant 0 : index
      %55 = vector.load %arg11[%c0_26, %c0_27] : memref<16x128xf32, #tpu.memory_space<vmem>>, vector<16x128xf32>
      tpu.vector_store %arg11[%c0_26, %c0_27], %54 {strides = array<i32>} : memref<16x128xf32, #tpu.memory_space<vmem>>, vector<16x128xf32>,
    } else {
    }
    %c2_i32 = arith.constant 2 : i32
    %16 = arith.cmpi eq, %arg0, %c2_i32 : i32
    %17 = arith.extui %16 : i1 to i32
    %c0_i32_5 = arith.constant 0 : i32
    %18 = arith.cmpi ne, %17, %c0_i32_5 : i32
    scf.if %18 {
      %c0_i32_6 = arith.constant 0 : i32
      %19 = arith.cmpi eq, %arg1, %c0_i32_6 : i32
      %20 = arith.extui %19 : i1 to i32
      %c0_i32_7 = arith.constant 0 : i32
      %21 = arith.cmpi ne, %20, %c0_i32_7 : i32
      scf.if %21 {
        %c0_30 = arith.constant 0 : index
        %c0_31 = arith.constant 0 : index
        %60 = vector.load %arg10[%c0_30, %c0_31] : memref<16x128xf32, #tpu.memory_space<vmem>>, vector<16x128xf32>
        %cst_32 = arith.constant dense<0.000000e+00> : vector<16xf32>
        %61 = vector.multi_reduction <add>, %60, %cst_32 [1] : vector<16x128xf32> to vector<16xf32>
        %62 = vector.shape_cast %61 : vector<16xf32> to vector<16x1xf32>
        %cst_33 = arith.constant 1.250000e-01 : f32
        %63 = vector.broadcast %cst_33 : f32 to vector<16x1xf32>
        %64 = arith.mulf %62, %63 : vector<16x1xf32>
        %c0_34 = arith.constant 0 : index
        %c0_35 = arith.constant 0 : index
        %65 = vector.load %arg11[%c0_34, %c0_35] : memref<16x128xf32, #tpu.memory_space<vmem>>, vector<16x128xf32>
        %cst_36 = arith.constant dense<0.000000e+00> : vector<16xf32>
        %66 = vector.multi_reduction <add>, %65, %cst_36 [1] : vector<16x128xf32> to vector<16xf32>
        %67 = vector.shape_cast %66 : vector<16xf32> to vector<16x1xf32>
        %cst_37 = arith.constant 1.250000e-01 : f32
        %68 = vector.broadcast %cst_37 : f32 to vector<16x1xf32>
        %69 = arith.mulf %67, %68 : vector<16x1xf32>
        %70 = arith.mulf %64, %64 : vector<16x1xf32>
        %71 = arith.subf %69, %70 : vector<16x1xf32>
        %cst_38 = arith.constant 0.000000e+00 : f32
        %72 = vector.broadcast %cst_38 : f32 to vector<16x1xf32>
        %73 = arith.maximumf %71, %72 : vector<16x1xf32>
        %cst_39 = arith.constant 9.99999974E-6 : f32
        %74 = vector.broadcast %cst_39 : f32 to vector<16x1xf32>
        %75 = arith.addf %73, %74 : vector<16x1xf32>
        %76 = math.rsqrt %75 : vector<16x1xf32>
        %77 = arith.mulf %6, %76 : vector<16x1xf32>
        %c0_40 = arith.constant 0 : index
        %c0_41 = arith.constant 0 : index
        %78 = vector.load %arg14[%c0_40, %c0_41] : memref<16x1xf32, #tpu.memory_space<vmem>>, vector<16x1xf32>
        tpu.vector_store %arg14[%c0_40, %c0_41], %77 {strides = array<i32>} : memref<16x1xf32, #tpu.memory_space<vmem>>, vector<16x1xf32>,
        %79 = arith.mulf %64, %77 : vector<16x1xf32>
        %80 = arith.subf %7, %79 : vector<16x1xf32>
        %c0_42 = arith.constant 0 : index
        %c0_43 = arith.constant 0 : index
        %81 = vector.load %arg15[%c0_42, %c0_43] : memref<16x1xf32, #tpu.memory_space<vmem>>, vector<16x1xf32>
        tpu.vector_store %arg15[%c0_42, %c0_43], %80 {strides = array<i32>} : memref<16x1xf32, #tpu.memory_space<vmem>>, vector<16x1xf32>,
      } else {
      }
      %c0_8 = arith.constant 0 : index
      %c0_9 = arith.constant 0 : index
      %22 = vector.load %arg2[%c0_8, %c0_9] : memref<128x64xf32, #tpu.memory_space<vmem>>, vector<128x64xf32>
      %c0_10 = arith.constant 0 : index
      %c0_11 = arith.constant 0 : index
      %23 = vector.load %arg3[%c0_10, %c0_11] : memref<32x64xf32, #tpu.memory_space<vmem>>, vector<32x64xf32>
      %cst = arith.constant dense<0.000000e+00> : vector<32x128xf32>
      %24 = tpu.matmul %23, %22, %cst {dimension_numbers = #tpu.dot_dimension_numbers<[1], [1], [0], [0], [0, 0, 1, 0], [], []>} : vector<32x64xf32>, vector<128x64xf32>, vector<32x128xf32> -> vector<32x128xf32>
      %25 = vector.broadcast %2 : vector<32x1xf32> to vector<32x128xf32>
      %26 = arith.addf %24, %25 : vector<32x128xf32>
      %c0_12 = arith.constant 0 : index
      %c0_13 = arith.constant 0 : index
      %27 = vector.load %arg12[%c0_12, %c0_13] : memref<32x1xf32, #tpu.memory_space<vmem>>, vector<32x1xf32>
      %28 = vector.broadcast %27 : vector<32x1xf32> to vector<32x128xf32>
      %29 = arith.mulf %26, %28 : vector<32x128xf32>
      %c0_14 = arith.constant 0 : index
      %c0_15 = arith.constant 0 : index
      %30 = vector.load %arg13[%c0_14, %c0_15] : memref<32x1xf32, #tpu.memory_space<vmem>>, vector<32x1xf32>
      %31 = vector.broadcast %30 : vector<32x1xf32> to vector<32x128xf32>
      %32 = arith.addf %29, %31 : vector<32x128xf32>
      %cst_16 = arith.constant 0.000000e+00 : f32
      %33 = vector.broadcast %cst_16 : f32 to vector<32x128xf32>
      %34 = arith.maximumf %32, %33 : vector<32x128xf32>
      %c0_17 = arith.constant 0 : index
      %c0_18 = arith.constant 0 : index
      %35 = vector.load %arg4[%c0_17, %c0_18] : memref<16x32xf32, #tpu.memory_space<vmem>>, vector<16x32xf32>
      %cst_19 = arith.constant dense<0.000000e+00> : vector<16x128xf32>
      %36 = tpu.matmul %35, %34, %cst_19 {dimension_numbers = #tpu.dot_dimension_numbers<[1], [0], [0], [1], [0, 0, 1, 1], [], []>} : vector<16x32xf32>, vector<32x128xf32>, vector<16x128xf32> -> vector<16x128xf32>
      %37 = vector.broadcast %5 : vector<16x1xf32> to vector<16x128xf32>
      %38 = arith.addf %36, %37 : vector<16x128xf32>
      %c0_20 = arith.constant 0 : index
      %c0_21 = arith.constant 0 : index
      %39 = vector.load %arg14[%c0_20, %c0_21] : memref<16x1xf32, #tpu.memory_space<vmem>>, vector<16x1xf32>
      %40 = vector.broadcast %39 : vector<16x1xf32> to vector<16x128xf32>
      %41 = arith.mulf %38, %40 : vector<16x128xf32>
      %c0_22 = arith.constant 0 : index
      %c0_23 = arith.constant 0 : index
      %42 = vector.load %arg15[%c0_22, %c0_23] : memref<16x1xf32, #tpu.memory_space<vmem>>, vector<16x1xf32>
      %43 = vector.broadcast %42 : vector<16x1xf32> to vector<16x128xf32>
      %44 = arith.addf %41, %43 : vector<16x128xf32>
      %cst_24 = arith.constant 0.000000e+00 : f32
      %45 = vector.broadcast %cst_24 : f32 to vector<16x128xf32>
      %46 = arith.maximumf %44, %45 : vector<16x128xf32>
      %47 = vector.broadcast %8 : vector<16x1xf32> to vector<16x128xf32>
      %48 = arith.mulf %46, %47 : vector<16x128xf32>
      %cst_25 = arith.constant dense<0.000000e+00> : vector<128xf32>
      %49 = vector.multi_reduction <add>, %48, %cst_25 [0] : vector<16x128xf32> to vector<128xf32>
      %50 = vector.shape_cast %49 : vector<128xf32> to vector<1x128xf32>
      %51 = vector.broadcast %9 : vector<1x1xf32> to vector<1x128xf32>
      %52 = arith.addf %50, %51 : vector<1x128xf32>
      %cst_26 = arith.constant 0.000000e+00 : f32
      %53 = vector.broadcast %cst_26 : f32 to vector<1x128xf32>
      %54 = arith.subf %53, %52 : vector<1x128xf32>
      %55 = math.exp %54 : vector<1x128xf32>
      %cst_27 = arith.constant 1.000000e+00 : f32
      %56 = vector.broadcast %cst_27 : f32 to vector<1x128xf32>
      %57 = arith.addf %56, %55 : vector<1x128xf32>
      %58 = tpu.reciprocal %57 : vector<1x128xf32> -> vector<1x128xf32>
      %c0_28 = arith.constant 0 : index
      %c0_29 = arith.constant 0 : index
      %59 = vector.load %arg7[%c0_28, %c0_29] : memref<1x128xf32, #tpu.memory_space<vmem>>, vector<1x128xf32>
      tpu.vector_store %arg7[%c0_28, %c0_29], %58 {strides = array<i32>} : memref<1x128xf32, #tpu.memory_space<vmem>>, vector<1x128xf32>,
    } else {
    }
    return
  }
  func.func @transform_0(%arg0: i32, %arg1: i32) -> (i32, i32) {
    %c0_i32 = arith.constant 0 : i32
    %c0_i32_0 = arith.constant 0 : i32
    return %arg1, %c0_i32 : i32, i32
  }
  func.func @transform_1(%arg0: i32, %arg1: i32) -> (i32, i32) {
    %c0_i32 = arith.constant 0 : i32
    %c0_i32_0 = arith.constant 0 : i32
    %c0_i32_1 = arith.constant 0 : i32
    return %c0_i32, %c0_i32_0 : i32, i32
  }
  func.func @transform_2(%arg0: i32, %arg1: i32) -> (i32, i32) {
    %c0_i32 = arith.constant 0 : i32
    %c0_i32_0 = arith.constant 0 : i32
    %c0_i32_1 = arith.constant 0 : i32
    return %c0_i32, %c0_i32_0 : i32, i32
  }
  func.func @transform_3(%arg0: i32, %arg1: i32) -> (i32, i32) {
    %c0_i32 = arith.constant 0 : i32
    %c0_i32_0 = arith.constant 0 : i32
    %c0_i32_1 = arith.constant 0 : i32
    return %c0_i32, %c0_i32_0 : i32, i32
  }
  func.func @transform_4(%arg0: i32, %arg1: i32) -> (i32, i32) {
    %c0_i32 = arith.constant 0 : i32
    %c0_i32_0 = arith.constant 0 : i32
    %c0_i32_1 = arith.constant 0 : i32
    return %c0_i32, %c0_i32_0 : i32, i32
  }
  func.func @transform_5(%arg0: i32, %arg1: i32) -> (i32, i32) {
    %c0_i32 = arith.constant 0 : i32
    %c0_i32_0 = arith.constant 0 : i32
    return %c0_i32, %arg1 : i32, i32
  }
}

</mosaic_0001>

<llo_original>
// kernel: tpu_custom_call.1
$region0: #{tpu_custom_call.1}
  #allocation0 [shape = 'u32[]', space=smem, size = 0x4, offset = 0x4, fixed_abs, tag = 'smem constant byte address 0x4 - core index']
  #allocation1 [shape = 'u32[72,128]{1,0:T(1,128)}', space=vmem, size = 0x9000, scoped, tag = 'internal scratch']
  #allocation2 [shape = 'f32[32,128]{1,0:T(8,128)}', space=vmem, size = 0x4000, scoped, tag = 'scratch operand']
  #allocation3 [shape = 'f32[32,128]{1,0:T(8,128)}', space=vmem, size = 0x4000, scoped, tag = 'scratch operand']
  #allocation4 [shape = 'f32[16,128]{1,0:T(8,128)}', space=vmem, size = 0x2000, scoped, tag = 'scratch operand']
  #allocation5 [shape = 'f32[16,128]{1,0:T(8,128)}', space=vmem, size = 0x2000, scoped, tag = 'scratch operand']
  #allocation6 [shape = 'f32[32,1]{1,0:T(8,128)}', space=vmem, size = 0x4000, scoped, tag = 'scratch operand']
  #allocation7 [shape = 'f32[32,1]{1,0:T(8,128)}', space=vmem, size = 0x4000, scoped, tag = 'scratch operand']
  #allocation8 [shape = 'f32[16,1]{1,0:T(8,128)}', space=vmem, size = 0x2000, scoped, tag = 'scratch operand']
  #allocation9 [shape = 'f32[16,1]{1,0:T(8,128)}', space=vmem, size = 0x2000, scoped, tag = 'scratch operand']
  %s0 = inlined_call_operand.vmem [shape: f32[128,64], index: 0, kind: input, shape index: {}]
  %s1 = inlined_call_operand.vmem [shape: f32[32,64], index: 1, kind: input, shape index: {}]
  %s2 = inlined_call_operand.vmem [shape: f32[16,32], index: 2, kind: input, shape index: {}]
  %s3 = inlined_call_operand.vmem [shape: f32[32,3], index: 3, kind: input, shape index: {}]
  %s4 = inlined_call_operand.vmem [shape: f32[16,5], index: 4, kind: input, shape index: {}]
  %s5 = inlined_call_operand.hbm [shape: f32[1,128], index: 5, kind: output, shape index: {}]
  %s6 = sld [smem:[#allocation0]]
  $region77: #{tpu_custom_call.1} parent=0
    _
  %s8 = ssub.s32 1, %s6
  %s9 = scalar_select 0, %s8, %s6
  $region1: #{tpu_custom_call.1} parent=0
    #allocation10 [shape = 'u8[512]{0}', space=vmem, size = 0x400, scoped, tag = 'output window, operand 0, single buffered']
    #allocation11 [shape = 's32[2]{0}', space=sflag, size = 0x8, scoped, tag = 'scoped memory for tpu_custom_call.1']
    %10 = vsyncpa [#allocation11], 0
    loop: start=0, step=1, limit=5
    $region2: #{tpu_custom_call.1} parent=1 // loop_pre_header
      _
    $region3: #{tpu_custom_call.1} parent=1 // loop_header
      %s12 = sphi 0, %s16
      %p13 = scmp.ge.s32.totalorder %s12, 5
      %s19 = sphi 0, %s31
      %s20 = sphi 0, %s27
      %s21 = sphi 0, %s19
      %s22 = sphi 0, %s20
      %s23 = sphi 0, %s21
      %s24 = sphi 0, %s22
      %s34 = sphi 0, %s36
      %s37 = sphi 0, %s34
      %s38 = sphi 0, %s37
      %s54 = sphi 0, %s38
      %s58 = sphi 0, %s58
      %s60 = sphi 0, %s58
      %s61 = sphi 0, %s60
      %s75 = sphi 0, %s61
      %s79 = sphi 0, %s79
      %s81 = sphi 0, %s79
      %s82 = sphi 0, %s81
      %s96 = sphi 0, %s82
      %s100 = sphi 0, %s100
      %s102 = sphi 0, %s100
      %s103 = sphi 0, %s102
      %s117 = sphi 0, %s103
      %s121 = sphi 0, %s121
      %s123 = sphi 0, %s121
      %s124 = sphi 0, %s123
      %s138 = sphi 0, %s124
      %s144 = sphi 0, %s146
      %s147 = sphi 0, %s144
      %s148 = sphi 0, %s147
      %s164 = sphi 0, %s148
    $region4: #{tpu_custom_call.1} parent=1 // loop_header_branch
      %15 = sbr.rel (%p13) target = $region8
    $region5: #{tpu_custom_call.1} parent=1 // loop_body
      %s17 = ssub.s32 %s12, 1
      %s18 = ssub.s32 %s12, 2
      %s25 = sadd.s32 1, %s20
      %p26 = scmp.ge.s32.totalorder %s25, 1
      %s27 = scalar_select %p26, 0, %s25
      %s28 = sadd.s32 1, %s19
      %s29 = scalar_select %p26, %s28, %s19
      %p30 = scmp.ge.s32.totalorder %s29, 3
      %s31 = scalar_select %p30, 0, %s29
      %s32 = ssub.s32 %s20, %s27
      %p33 = scmp.eq.s32.totalorder %s32, 0
      %s35 = sadd.s32 %s34, 1
      %s36 = scalar_select %p33, %s34, %s35
      %p39 = pneg %p33
      %p40 = scmp.eq.s32.totalorder %s12, 2
      %p41 = por %p39, %p40
      %p42 = scmp.ne.s32.totalorder %s34, %s37
      %p43 = scmp.eq.s32.totalorder %s12, 0
      %p44 = por %p42, %p43
      %p45 = scmp.ne.s32.totalorder %s34, %s37
      %p46 = scmp.eq.s32.totalorder %s17, 2
      %p47 = por %p45, %p46
      %p48 = scmp.ne.s32.totalorder %s37, %s38
      %p49 = scmp.eq.s32.totalorder %s17, 0
      %p50 = por %p48, %p49
      %p51 = scmp.ne.s32.totalorder %s37, %s38
      %p52 = scmp.eq.s32.totalorder %s18, 2
      %p53 = por %p51, %p52
      %p55 = scmp.ne.s32.totalorder %s38, %s54
      %p56 = scmp.eq.s32.totalorder %s18, 0
      %p57 = por %p55, %p56
      %s59 = sadd.s32 %s58, 1
      %p62 = scmp.eq.s32.totalorder %s12, 2
      %p63 = scmp.ne.s32.totalorder %s58, %s60
      %p64 = scmp.eq.s32.totalorder %s12, 0
      %p65 = por %p63, %p64
      %p66 = scmp.ne.s32.totalorder %s58, %s60
      %p67 = scmp.eq.s32.totalorder %s17, 2
      %p68 = por %p66, %p67
      %p69 = scmp.ne.s32.totalorder %s60, %s61
      %p70 = scmp.eq.s32.totalorder %s17, 0
      %p71 = por %p69, %p70
      %p72 = scmp.ne.s32.totalorder %s60, %s61
      %p73 = scmp.eq.s32.totalorder %s18, 2
      %p74 = por %p72, %p73
      %p76 = scmp.ne.s32.totalorder %s61, %s75
      %p77 = scmp.eq.s32.totalorder %s18, 0
      %p78 = por %p76, %p77
      %s80 = sadd.s32 %s79, 1
      %p83 = scmp.eq.s32.totalorder %s12, 2
      %p84 = scmp.ne.s32.totalorder %s79, %s81
      %p85 = scmp.eq.s32.totalorder %s12, 0
      %p86 = por %p84, %p85
      %p87 = scmp.ne.s32.totalorder %s79, %s81
      %p88 = scmp.eq.s32.totalorder %s17, 2
      %p89 = por %p87, %p88
      %p90 = scmp.ne.s32.totalorder %s81, %s82
      %p91 = scmp.eq.s32.totalorder %s17, 0
      %p92 = por %p90, %p91
      %p93 = scmp.ne.s32.totalorder %s81, %s82
      %p94 = scmp.eq.s32.totalorder %s18, 2
      %p95 = por %p93, %p94
      %p97 = scmp.ne.s32.totalorder %s82, %s96
      %p98 = scmp.eq.s32.totalorder %s18, 0
      %p99 = por %p97, %p98
      %s101 = sadd.s32 %s100, 1
      %p104 = scmp.eq.s32.totalorder %s12, 2
      %p105 = scmp.ne.s32.totalorder %s100, %s102
      %p106 = scmp.eq.s32.totalorder %s12, 0
      %p107 = por %p105, %p106
      %p108 = scmp.ne.s32.totalorder %s100, %s102
      %p109 = scmp.eq.s32.totalorder %s17, 2
      %p110 = por %p108, %p109
      %p111 = scmp.ne.s32.totalorder %s102, %s103
      %p112 = scmp.eq.s32.totalorder %s17, 0
      %p113 = por %p111, %p112
      %p114 = scmp.ne.s32.totalorder %s102, %s103
      %p115 = scmp.eq.s32.totalorder %s18, 2
      %p116 = por %p114, %p115
      %p118 = scmp.ne.s32.totalorder %s103, %s117
      %p119 = scmp.eq.s32.totalorder %s18, 0
      %p120 = por %p118, %p119
      %s122 = sadd.s32 %s121, 1
      %p125 = scmp.eq.s32.totalorder %s12, 2
      %p126 = scmp.ne.s32.totalorder %s121, %s123
      %p127 = scmp.eq.s32.totalorder %s12, 0
      %p128 = por %p126, %p127
      %p129 = scmp.ne.s32.totalorder %s121, %s123
      %p130 = scmp.eq.s32.totalorder %s17, 2
      %p131 = por %p129, %p130
      %p132 = scmp.ne.s32.totalorder %s123, %s124
      %p133 = scmp.eq.s32.totalorder %s17, 0
      %p134 = por %p132, %p133
      %p135 = scmp.ne.s32.totalorder %s123, %s124
      %p136 = scmp.eq.s32.totalorder %s18, 2
      %p137 = por %p135, %p136
      %p139 = scmp.ne.s32.totalorder %s124, %s138
      %p140 = scmp.eq.s32.totalorder %s18, 0
      %p141 = por %p139, %p140
      %s142 = ssub.s32 %s20, %s27
      %p143 = scmp.eq.s32.totalorder %s142, 0
      %s145 = sadd.s32 %s144, 1
      %s146 = scalar_select %p143, %s144, %s145
      %p149 = pneg %p143
      %p150 = scmp.eq.s32.totalorder %s12, 2
      %p151 = por %p149, %p150
      %p152 = scmp.ne.s32.totalorder %s144, %s147
      %p153 = scmp.eq.s32.totalorder %s12, 0
      %p154 = por %p152, %p153
      %p155 = scmp.ne.s32.totalorder %s144, %s147
      %p156 = scmp.eq.s32.totalorder %s17, 2
      %p157 = por %p155, %p156
      %p158 = scmp.ne.s32.totalorder %s147, %s148
      %p159 = scmp.eq.s32.totalorder %s17, 0
      %p160 = por %p158, %p159
      %p161 = scmp.ne.s32.totalorder %s147, %s148
      %p162 = scmp.eq.s32.totalorder %s18, 2
      %p163 = por %p161, %p162
      %p165 = scmp.ne.s32.totalorder %s148, %s164
      %p166 = scmp.eq.s32.totalorder %s18, 0
      %p167 = por %p165, %p166
      %p168 = scmp.le.s32.totalorder 1, %s12
      %p169 = scmp.lt.s32.totalorder %s12, 4
      %p170 = pnand %p168, %p169
      %p171 = pneg %p170
      // Predicated region
      $region9: #{tpu_custom_call.1} parent=5 // pred_check
        _
      $region10: #{tpu_custom_call.1} parent=5 // pred_check_branch
        %173 = sbr.rel (%p170) target = $region12
      $region11: #{tpu_custom_call.1} parent=5 // pred_region
        %s174 = ssub.s32 %s12, 1
        // Predicated region
        $region13: #{tpu_custom_call.1} parent=11 // pred_check
          %p175 = pneg %p50
        $region14: #{tpu_custom_call.1} parent=11 // pred_check_branch
          %177 = sbr.rel (%p175) target = $region16
        $region15: #{tpu_custom_call.1} parent=11 // pred_region
          %s178 = smul.u32 16, %s22
          %p179 = scmp.lt.s32.totalorder %s178, 15
          %s180 = scalar_select %p179, %s178, 15
          %s181 = smul.addr %s180, 8
          %s182 = scalar_lea.vmem %s0, %s181
          %s183 = smul.u32 16, %s22
        $region16: #{tpu_custom_call.1} parent=11 // pred_fallthru
          _
        // Predicated region
        $region17: #{tpu_custom_call.1} parent=11 // pred_check
          %p184 = pneg %p71
        $region18: #{tpu_custom_call.1} parent=11 // pred_check_branch
          %186 = sbr.rel (%p184) target = $region20
        $region19: #{tpu_custom_call.1} parent=11 // pred_region
          _
        $region20: #{tpu_custom_call.1} parent=11 // pred_fallthru
          _
        // Predicated region
        $region21: #{tpu_custom_call.1} parent=11 // pred_check
          %p187 = pneg %p92
        $region22: #{tpu_custom_call.1} parent=11 // pred_check_branch
          %189 = sbr.rel (%p187) target = $region24
        $region23: #{tpu_custom_call.1} parent=11 // pred_region
          _
        $region24: #{tpu_custom_call.1} parent=11 // pred_fallthru
          _
        // Predicated region
        $region25: #{tpu_custom_call.1} parent=11 // pred_check
          %p190 = pneg %p113
        $region26: #{tpu_custom_call.1} parent=11 // pred_check_branch
          %192 = sbr.rel (%p190) target = $region28
        $region27: #{tpu_custom_call.1} parent=11 // pred_region
          _
        $region28: #{tpu_custom_call.1} parent=11 // pred_fallthru
          _
        // Predicated region
        $region29: #{tpu_custom_call.1} parent=11 // pred_check
          %p193 = pneg %p134
        $region30: #{tpu_custom_call.1} parent=11 // pred_check_branch
          %195 = sbr.rel (%p193) target = $region32
        $region31: #{tpu_custom_call.1} parent=11 // pred_region
          _
        $region32: #{tpu_custom_call.1} parent=11 // pred_fallthru
          _
      $region12: #{tpu_custom_call.1} parent=5 // pred_fallthru
        _
      %p196 = scmp.lt.s32.totalorder %s12, 3
      // Predicated region
      $region33: #{tpu_custom_call.1} parent=5 // pred_check
        %p197 = pneg %p196
      $region34: #{tpu_custom_call.1} parent=5 // pred_check_branch
        %199 = sbr.rel (%p197) target = $region36
      $region35: #{tpu_custom_call.1} parent=5 // pred_region
        _
      $region36: #{tpu_custom_call.1} parent=5 // pred_fallthru
        _
      %p200 = scmp.le.s32.totalorder 1, %s12
      %p201 = scmp.lt.s32.totalorder %s12, 4
      %p202 = pnand %p200, %p201
      %p203 = pneg %p202
      // Predicated region
      $region37: #{tpu_custom_call.1} parent=5 // pred_check
        _
      $region38: #{tpu_custom_call.1} parent=5 // pred_check_branch
        %205 = sbr.rel (%p202) target = $region40
      $region39: #{tpu_custom_call.1} parent=5 // pred_region
        %s206 = ssub.s32 %s12, 1
        %s207 = smul.u32 16, %s22
        %p208 = scmp.lt.s32.totalorder %s207, 15
        %s209 = scalar_select %p208, %s207, 15
        %s210 = smul.addr %s209, 8
        %s211 = scalar_lea.vmem %s0, %s210
        %p212 = pneg %p50
        %p213 = pneg %p47
        %p214 = pneg %p71
        %p215 = pneg %p68
        %p216 = pneg %p92
        %p217 = pneg %p89
        %p218 = pneg %p113
        %p219 = pneg %p110
        %p220 = pneg %p134
        %p221 = pneg %p131
        %p222 = pneg %p160
        %p223 = pneg %p157
        %s224 = smul.u32 16, %s22
        %p225 = scmp.lt.s32.totalorder %s224, 15
        %s226 = scalar_select %p225, %s224, 15
        %s227 = smul.addr %s226, 8
        %s228 = scalar_lea.vmem %s0, %s227
        %s229 = smul.u32 16, %s22
        %v230 = vld [vmem:[%s3] sm:$0xff]
        %v231 = vld [vmem:[%s3 + $0x8] sm:$0xff]
        %v232 = vld [vmem:[%s3 + $0x10] sm:$0xff]
        %v233 = vld [vmem:[%s3 + $0x18] sm:$0xff]
        %v234 = vld [vmem:[%s4] sm:$0xff]
        %v235 = vld [vmem:[%s4 + $0x8] sm:$0xff]
        %p236 = scmp.eq.s32.totalorder %s21, 0
        // Predicated region
        $region41: #{tpu_custom_call.1} parent=39 // pred_check
          %p237 = pneg %p236
        $region42: #{tpu_custom_call.1} parent=39 // pred_check_branch
          %239 = sbr.rel (%p237) target = $region44
        $region43: #{tpu_custom_call.1} parent=39 // pred_region
          %p240 = scmp.eq.s32.totalorder %s22, 0
          // Predicated region
          $region45: #{tpu_custom_call.1} parent=43 // pred_check
            %p241 = pneg %p240
          $region46: #{tpu_custom_call.1} parent=43 // pred_check_branch
            %243 = sbr.rel (%p241) target = $region48
          $region47: #{tpu_custom_call.1} parent=43 // pred_region
            %244 = vst [vmem:[#allocation2] sm:$0xff] 0.0
            %245 = vst [vmem:[#allocation2 + $0x8] sm:$0xff] 0.0
            %246 = vst [vmem:[#allocation2 + $0x10] sm:$0xff] 0.0
            %247 = vst [vmem:[#allocation2 + $0x18] sm:$0xff] 0.0
            %248 = vst [vmem:[#allocation3] sm:$0xff] 0.0
            %249 = vst [vmem:[#allocation3 + $0x8] sm:$0xff] 0.0
            %250 = vst [vmem:[#allocation3 + $0x10] sm:$0xff] 0.0
            %251 = vst [vmem:[#allocation3 + $0x18] sm:$0xff] 0.0
          $region48: #{tpu_custom_call.1} parent=43 // pred_fallthru
            _
          %v252 = vld [vmem:[%s228] sm:$0xff]
          %v253 = vld [vmem:[%s228 + $0x8] sm:$0xff]
          %v254 = vld [vmem:[%s228 + $0x10] sm:$0xff]
          %v255 = vld [vmem:[%s228 + $0x18] sm:$0xff]
          %v256 = vld [vmem:[%s228 + $0x20] sm:$0xff]
          %v257 = vld [vmem:[%s228 + $0x28] sm:$0xff]
          %v258 = vld [vmem:[%s228 + $0x30] sm:$0xff]
          %v259 = vld [vmem:[%s228 + $0x38] sm:$0xff]
          %v260 = vld [vmem:[%s228 + $0x40] sm:$0xff]
          %v261 = vld [vmem:[%s228 + $0x48] sm:$0xff]
          %v262 = vld [vmem:[%s228 + $0x50] sm:$0xff]
          %v263 = vld [vmem:[%s228 + $0x58] sm:$0xff]
          %v264 = vld [vmem:[%s228 + $0x60] sm:$0xff]
          %v265 = vld [vmem:[%s228 + $0x68] sm:$0xff]
          %v266 = vld [vmem:[%s228 + $0x70] sm:$0xff]
          %v267 = vld [vmem:[%s228 + $0x78] sm:$0xff]
          %v268 = vld [vmem:[%s1] sm:$0xff]
          %v269 = vld [vmem:[%s1 + $0x8] sm:$0xff]
          %v270 = vld [vmem:[%s1 + $0x10] sm:$0xff]
          %v271 = vld [vmem:[%s1 + $0x18] sm:$0xff]
          %273 = vset.pattern.permute.xlu0 0
          %274 = vperm.xlu0 %273, %v230
          %v275 = vpop.permute.xlu0 %274
          %278 = vset.pattern.permute.xlu0 0
          %279 = vperm.xlu0 %278, %v231
          %v280 = vpop.permute.xlu0 %279
          %283 = vset.pattern.permute.xlu0 0
          %284 = vperm.xlu0 %283, %v232
          %v285 = vpop.permute.xlu0 %284
          %288 = vset.pattern.permute.xlu0 0
          %289 = vperm.xlu0 %288, %v233
          %v290 = vpop.permute.xlu0 %289
          %vm292 = vcmask 523264
          %v294 = vsel %vm292, %v268, 0
          %v297 = vsel %vm292, %v269, 0
          %v300 = vsel %vm292, %v270, 0
          %v303 = vsel %vm292, %v271, 0
          %v306 = vsel %vm292, %v252, 0
          %v309 = vsel %vm292, %v253, 0
          %v312 = vsel %vm292, %v254, 0
          %v315 = vsel %vm292, %v255, 0
          %v318 = vsel %vm292, %v256, 0
          %v321 = vsel %vm292, %v257, 0
          %v324 = vsel %vm292, %v258, 0
          %v327 = vsel %vm292, %v259, 0
          %v330 = vsel %vm292, %v260, 0
          %v333 = vsel %vm292, %v261, 0
          %v336 = vsel %vm292, %v262, 0
          %v339 = vsel %vm292, %v263, 0
          %v342 = vsel %vm292, %v264, 0
          %v345 = vsel %vm292, %v265, 0
          %v348 = vsel %vm292, %v266, 0
          %v351 = vsel %vm292, %v267, 0
          %353 = vmatpush.xpose.msra.mxu0 %v351
          %354 = vmatpush.xpose.msra.mxu0 %v348
          %355 = vmatpush.xpose.msra.mxu0 %v345
          %356 = vmatpush.xpose.msra.mxu0 %v342
          %357 = vmatpush.xpose.msra.mxu0 %v339
          %358 = vmatpush.xpose.msra.mxu0 %v336
          %359 = vmatpush.xpose.msra.mxu0 %v333
          %360 = vmatpush.xpose.msra.mxu0 %v330
          %361 = vmatpush.xpose.msra.mxu0 %v327
          %362 = vmatpush.xpose.msra.mxu0 %v324
          %363 = vmatpush.xpose.msra.mxu0 %v321
          %364 = vmatpush.xpose.msra.mxu0 %v318
          %365 = vmatpush.xpose.msra.mxu0 %v315
          %366 = vmatpush.xpose.msra.mxu0 %v312
          %367 = vmatpush.xpose.msra.mxu0 %v309
          %368 = vmatpush.xpose.msra.mxu0 %v306
          %369 = vmatmul.f32.gmra.mxu0 %v294
          %v370 = vpop.f32.mrf.mxu0
          %v371 = vadd.f32 %v275, %v370
          %372 = vmatmul.f32.gmra.mxu0 %v297
          %v373 = vpop.f32.mrf.mxu0
          %v374 = vadd.f32 %v280, %v373
          %375 = vmatmul.f32.gmra.mxu0 %v300
          %v376 = vpop.f32.mrf.mxu0
          %v377 = vadd.f32 %v285, %v376
          %378 = vmatmul.f32.gmra.mxu0 %v303
          %v379 = vpop.f32.mrf.mxu0
          %v380 = vadd.f32 %v290, %v379
          %381 = vdwg.mxu0
          %v382 = vlaneseq
          %v383 = vand.u32 %v382, 127
          %s384 = smul.u32 %s22, 128
          %v385 = vstv %s384
          %v386 = vadd.s32 %v385, %v383
          %vm387 = vcmp.lt.s32.totalorder %v386, 8
          %v388 = vsel %vm387, 1, 0
          %v389 = vcvt.s32.f32 %v388
          %v390 = vmul.f32 %v371, %v389
          %v391 = vmul.f32 %v374, %v389
          %v392 = vmul.f32 %v377, %v389
          %v393 = vmul.f32 %v380, %v389
          %v394 = vld [vmem:[#allocation2] sm:$0xff]
          %v395 = vld [vmem:[#allocation2 + $0x8] sm:$0xff]
          %v396 = vld [vmem:[#allocation2 + $0x10] sm:$0xff]
          %v397 = vld [vmem:[#allocation2 + $0x18] sm:$0xff]
          %v398 = vadd.f32 %v394, %v390
          %v399 = vadd.f32 %v395, %v391
          %v400 = vadd.f32 %v396, %v392
          %v401 = vadd.f32 %v397, %v393
          %402 = vst [vmem:[#allocation2] sm:$0xff] %v398
          %403 = vst [vmem:[#allocation2 + $0x8] sm:$0xff] %v399
          %404 = vst [vmem:[#allocation2 + $0x10] sm:$0xff] %v400
          %405 = vst [vmem:[#allocation2 + $0x18] sm:$0xff] %v401
          %v406 = vld [vmem:[#allocation3] sm:$0xff]
          %v407 = vld [vmem:[#allocation3 + $0x8] sm:$0xff]
          %v408 = vld [vmem:[#allocation3 + $0x10] sm:$0xff]
          %v409 = vld [vmem:[#allocation3 + $0x18] sm:$0xff]
          %v410 = vmul.f32 %v390, %v390
          %v411 = vmul.f32 %v391, %v391
          %v412 = vmul.f32 %v392, %v392
          %v413 = vmul.f32 %v393, %v393
          %v414 = vadd.f32 %v406, %v410
          %v415 = vadd.f32 %v407, %v411
          %v416 = vadd.f32 %v408, %v412
          %v417 = vadd.f32 %v409, %v413
          %418 = vst [vmem:[#allocation3] sm:$0xff] %v414
          %419 = vst [vmem:[#allocation3 + $0x8] sm:$0xff] %v415
          %420 = vst [vmem:[#allocation3 + $0x10] sm:$0xff] %v416
          %421 = vst [vmem:[#allocation3 + $0x18] sm:$0xff] %v417
        $region44: #{tpu_custom_call.1} parent=39 // pred_fallthru
          _
        %p422 = scmp.eq.s32.totalorder %s21, 1
        // Predicated region
        $region49: #{tpu_custom_call.1} parent=39 // pred_check
          %p423 = pneg %p422
        $region50: #{tpu_custom_call.1} parent=39 // pred_check_branch
          %425 = sbr.rel (%p423) target = $region52
        $region51: #{tpu_custom_call.1} parent=39 // pred_region
          %p426 = scmp.eq.s32.totalorder %s22, 0
          // Predicated region
          $region53: #{tpu_custom_call.1} parent=51 // pred_check
            %p427 = pneg %p426
          $region54: #{tpu_custom_call.1} parent=51 // pred_check_branch
            %429 = sbr.rel (%p427) target = $region56
          $region55: #{tpu_custom_call.1} parent=51 // pred_region
            %v430 = vld [vmem:[#allocation2] sm:$0xff]
            %v431 = vld [vmem:[#allocation2 + $0x8] sm:$0xff]
            %v432 = vld [vmem:[#allocation2 + $0x10] sm:$0xff]
            %v433 = vld [vmem:[#allocation2 + $0x18] sm:$0xff]
            %434 = vadd.xlane.f32.xlu0 %v430
            %v435 = vpop.xlane.xlu0 %434
            %436 = vadd.xlane.f32.xlu0 %v431
            %v437 = vpop.xlane.xlu0 %436
            %438 = vadd.xlane.f32.xlu0 %v432
            %v439 = vpop.xlane.xlu0 %438
            %440 = vadd.xlane.f32.xlu0 %v433
            %v441 = vpop.xlane.xlu0 %440
            %v442 = vmul.f32 %v435, 0.125
            %v443 = vmul.f32 %v437, 0.125
            %v444 = vmul.f32 %v439, 0.125
            %v445 = vmul.f32 %v441, 0.125
            %v446 = vld [vmem:[#allocation3] sm:$0xff]
            %v447 = vld [vmem:[#allocation3 + $0x8] sm:$0xff]
            %v448 = vld [vmem:[#allocation3 + $0x10] sm:$0xff]
            %v449 = vld [vmem:[#allocation3 + $0x18] sm:$0xff]
            %450 = vadd.xlane.f32.xlu0 %v446
            %v451 = vpop.xlane.xlu0 %450
            %452 = vadd.xlane.f32.xlu0 %v447
            %v453 = vpop.xlane.xlu0 %452
            %454 = vadd.xlane.f32.xlu0 %v448
            %v455 = vpop.xlane.xlu0 %454
            %456 = vadd.xlane.f32.xlu0 %v449
            %v457 = vpop.xlane.xlu0 %456
            %v458 = vmul.f32 %v451, 0.125
            %v459 = vmul.f32 %v453, 0.125
            %v460 = vmul.f32 %v455, 0.125
            %v461 = vmul.f32 %v457, 0.125
            %v462 = vmul.f32 %v442, %v442
            %v463 = vmul.f32 %v443, %v443
            %v464 = vmul.f32 %v444, %v444
            %v465 = vmul.f32 %v445, %v445
            %v466 = vsub.f32 %v458, %v462
            %v467 = vsub.f32 %v459, %v463
            %v468 = vsub.f32 %v460, %v464
            %v469 = vsub.f32 %v461, %v465
            %v470 = vmax.f32 %v466, 0.0
            %v471 = vmax.f32 %v467, 0.0
            %v472 = vmax.f32 %v468, 0.0
            %v473 = vmax.f32 %v469, 0.0
            %v474 = vadd.f32 %v470, 1e-05
            %v475 = vadd.f32 %v471, 1e-05
            %v476 = vadd.f32 %v472, 1e-05
            %v477 = vadd.f32 %v473, 1e-05
            %v478 = vrsqrt.pop %v474
            %v479 = vmul.f32 %v478, %v474
            %v480 = vmul.f32 %v479, %v478
            %v481 = vmul.f32 0.5, %v480
            %v482 = vsub.f32 1.5, %v481
            %v483 = vmul.f32 %v478, %v482
            %vm484 = vweird.f32 %v474
            %vm485 = vweird.f32 %v478
            %vm486 = vmor %vm484, %vm485
            %v487 = vsel %vm486, %v478, %v483
            %v488 = vrsqrt.pop %v475
            %v489 = vmul.f32 %v488, %v475
            %v490 = vmul.f32 %v489, %v488
            %v491 = vmul.f32 0.5, %v490
            %v492 = vsub.f32 1.5, %v491
            %v493 = vmul.f32 %v488, %v492
            %vm494 = vweird.f32 %v475
            %vm495 = vweird.f32 %v488
            %vm496 = vmor %vm494, %vm495
            %v497 = vsel %vm496, %v488, %v493
            %v498 = vrsqrt.pop %v476
            %v499 = vmul.f32 %v498, %v476
            %v500 = vmul.f32 %v499, %v498
            %v501 = vmul.f32 0.5, %v500
            %v502 = vsub.f32 1.5, %v501
            %v503 = vmul.f32 %v498, %v502
            %vm504 = vweird.f32 %v476
            %vm505 = vweird.f32 %v498
            %vm506 = vmor %vm504, %vm505
            %v507 = vsel %vm506, %v498, %v503
            %v508 = vrsqrt.pop %v477
            %v509 = vmul.f32 %v508, %v477
            %v510 = vmul.f32 %v509, %v508
            %v511 = vmul.f32 0.5, %v510
            %v512 = vsub.f32 1.5, %v511
            %v513 = vmul.f32 %v508, %v512
            %vm514 = vweird.f32 %v477
            %vm515 = vweird.f32 %v508
            %vm516 = vmor %vm514, %vm515
            %v517 = vsel %vm516, %v508, %v513
            %v518 = vmul.f32 %v230, %v487
            %v519 = vmul.f32 %v231, %v497
            %v520 = vmul.f32 %v232, %v507
            %v521 = vmul.f32 %v233, %v517
            %526 = vrot.lane.b32.xlu0 %v518, 127
            %v527 = vpop.permute.xlu0 %526
            %528 = vrot.lane.b32.xlu0 %v519, 127
            %v529 = vpop.permute.xlu0 %528
            %530 = vrot.lane.b32.xlu0 %v520, 127
            %v531 = vpop.permute.xlu0 %530
            %532 = vrot.lane.b32.xlu0 %v521, 127
            %v533 = vpop.permute.xlu0 %532
            %vm538 = vcmask 7168
            %539 = vst.msk [vmem:[#allocation6] sm:$0xff] %vm538, %v527
            %540 = vst.msk [vmem:[#allocation6 + $0x8] sm:$0xff] %vm538, %v529
            %541 = vst.msk [vmem:[#allocation6 + $0x10] sm:$0xff] %vm538, %v531
            %542 = vst.msk [vmem:[#allocation6 + $0x18] sm:$0xff] %vm538, %v533
            %v543 = vmul.f32 %v442, %v518
            %v544 = vmul.f32 %v443, %v519
            %v545 = vmul.f32 %v444, %v520
            %v546 = vmul.f32 %v445, %v521
            %551 = vrot.lane.b32.xlu0 %v543, 1
            %v552 = vpop.permute.xlu0 %551
            %553 = vrot.lane.b32.xlu0 %v544, 1
            %v554 = vpop.permute.xlu0 %553
            %555 = vrot.lane.b32.xlu0 %v545, 1
            %v556 = vpop.permute.xlu0 %555
            %557 = vrot.lane.b32.xlu0 %v546, 1
            %v558 = vpop.permute.xlu0 %557
            %v563 = vsub.f32 %v230, %v552
            %v564 = vsub.f32 %v231, %v554
            %v565 = vsub.f32 %v232, %v556
            %v566 = vsub.f32 %v233, %v558
            %571 = vrot.lane.b32.xlu0 %v563, 126
            %v572 = vpop.permute.xlu0 %571
            %573 = vrot.lane.b32.xlu0 %v564, 126
            %v574 = vpop.permute.xlu0 %573
            %575 = vrot.lane.b32.xlu0 %v565, 126
            %v576 = vpop.permute.xlu0 %575
            %577 = vrot.lane.b32.xlu0 %v566, 126
            %v578 = vpop.permute.xlu0 %577
            %583 = vst.msk [vmem:[#allocation7] sm:$0xff] %vm538, %v572
            %584 = vst.msk [vmem:[#allocation7 + $0x8] sm:$0xff] %vm538, %v574
            %585 = vst.msk [vmem:[#allocation7 + $0x10] sm:$0xff] %vm538, %v576
            %586 = vst.msk [vmem:[#allocation7 + $0x18] sm:$0xff] %vm538, %v578
            %587 = vst [vmem:[#allocation4] sm:$0xff] 0.0
            %588 = vst [vmem:[#allocation4 + $0x8] sm:$0xff] 0.0
            %589 = vst [vmem:[#allocation5] sm:$0xff] 0.0
            %590 = vst [vmem:[#allocation5 + $0x8] sm:$0xff] 0.0
          $region56: #{tpu_custom_call.1} parent=51 // pred_fallthru
            _
          %v591 = vld [vmem:[%s228] sm:$0xff]
          %v592 = vld [vmem:[%s228 + $0x8] sm:$0xff]
          %v593 = vld [vmem:[%s228 + $0x10] sm:$0xff]
          %v594 = vld [vmem:[%s228 + $0x18] sm:$0xff]
          %v595 = vld [vmem:[%s228 + $0x20] sm:$0xff]
          %v596 = vld [vmem:[%s228 + $0x28] sm:$0xff]
          %v597 = vld [vmem:[%s228 + $0x30] sm:$0xff]
          %v598 = vld [vmem:[%s228 + $0x38] sm:$0xff]
          %v599 = vld [vmem:[%s228 + $0x40] sm:$0xff]
          %v600 = vld [vmem:[%s228 + $0x48] sm:$0xff]
          %v601 = vld [vmem:[%s228 + $0x50] sm:$0xff]
          %v602 = vld [vmem:[%s228 + $0x58] sm:$0xff]
          %v603 = vld [vmem:[%s228 + $0x60] sm:$0xff]
          %v604 = vld [vmem:[%s228 + $0x68] sm:$0xff]
          %v605 = vld [vmem:[%s228 + $0x70] sm:$0xff]
          %v606 = vld [vmem:[%s228 + $0x78] sm:$0xff]
          %v607 = vld [vmem:[%s1] sm:$0xff]
          %v608 = vld [vmem:[%s1 + $0x8] sm:$0xff]
          %v609 = vld [vmem:[%s1 + $0x10] sm:$0xff]
          %v610 = vld [vmem:[%s1 + $0x18] sm:$0xff]
          %612 = vset.pattern.permute.xlu0 0
          %613 = vperm.xlu0 %612, %v230
          %v614 = vpop.permute.xlu0 %613
          %617 = vset.pattern.permute.xlu0 0
          %618 = vperm.xlu0 %617, %v231
          %v619 = vpop.permute.xlu0 %618
          %622 = vset.pattern.permute.xlu0 0
          %623 = vperm.xlu0 %622, %v232
          %v624 = vpop.permute.xlu0 %623
          %627 = vset.pattern.permute.xlu0 0
          %628 = vperm.xlu0 %627, %v233
          %v629 = vpop.permute.xlu0 %628
          %vm631 = vcmask 523264
          %v633 = vsel %vm631, %v607, 0
          %v636 = vsel %vm631, %v608, 0
          %v639 = vsel %vm631, %v609, 0
          %v642 = vsel %vm631, %v610, 0
          %v645 = vsel %vm631, %v591, 0
          %v648 = vsel %vm631, %v592, 0
          %v651 = vsel %vm631, %v593, 0
          %v654 = vsel %vm631, %v594, 0
          %v657 = vsel %vm631, %v595, 0
          %v660 = vsel %vm631, %v596, 0
          %v663 = vsel %vm631, %v597, 0
          %v666 = vsel %vm631, %v598, 0
          %v669 = vsel %vm631, %v599, 0
          %v672 = vsel %vm631, %v600, 0
          %v675 = vsel %vm631, %v601, 0
          %v678 = vsel %vm631, %v602, 0
          %v681 = vsel %vm631, %v603, 0
          %v684 = vsel %vm631, %v604, 0
          %v687 = vsel %vm631, %v605, 0
          %v690 = vsel %vm631, %v606, 0
          %692 = vmatpush.xpose.msra.mxu0 %v690
          %693 = vmatpush.xpose.msra.mxu0 %v687
          %694 = vmatpush.xpose.msra.mxu0 %v684
          %695 = vmatpush.xpose.msra.mxu0 %v681
          %696 = vmatpush.xpose.msra.mxu0 %v678
          %697 = vmatpush.xpose.msra.mxu0 %v675
          %698 = vmatpush.xpose.msra.mxu0 %v672
          %699 = vmatpush.xpose.msra.mxu0 %v669
          %700 = vmatpush.xpose.msra.mxu0 %v666
          %701 = vmatpush.xpose.msra.mxu0 %v663
          %702 = vmatpush.xpose.msra.mxu0 %v660
          %703 = vmatpush.xpose.msra.mxu0 %v657
          %704 = vmatpush.xpose.msra.mxu0 %v654
          %705 = vmatpush.xpose.msra.mxu0 %v651
          %706 = vmatpush.xpose.msra.mxu0 %v648
          %707 = vmatpush.xpose.msra.mxu0 %v645
          %708 = vmatmul.f32.gmra.mxu0 %v633
          %v709 = vpop.f32.mrf.mxu0
          %v710 = vadd.f32 %v614, %v709
          %711 = vmatmul.f32.gmra.mxu0 %v636
          %v712 = vpop.f32.mrf.mxu0
          %v713 = vadd.f32 %v619, %v712
          %714 = vmatmul.f32.gmra.mxu0 %v639
          %v715 = vpop.f32.mrf.mxu0
          %v716 = vadd.f32 %v624, %v715
          %717 = vmatmul.f32.gmra.mxu0 %v642
          %v718 = vpop.f32.mrf.mxu0
          %v719 = vadd.f32 %v629, %v718
          %720 = vdwg.mxu0
          %v721 = vld [vmem:[#allocation6] sm:$0xff]
          %v722 = vld [vmem:[#allocation6 + $0x8] sm:$0xff]
          %v723 = vld [vmem:[#allocation6 + $0x10] sm:$0xff]
          %v724 = vld [vmem:[#allocation6 + $0x18] sm:$0xff]
          %726 = vset.pattern.permute.xlu0 0
          %727 = vperm.xlu0 %726, %v721
          %v728 = vpop.permute.xlu0 %727
          %731 = vset.pattern.permute.xlu0 0
          %732 = vperm.xlu0 %731, %v722
          %v733 = vpop.permute.xlu0 %732
          %736 = vset.pattern.permute.xlu0 0
          %737 = vperm.xlu0 %736, %v723
          %v738 = vpop.permute.xlu0 %737
          %741 = vset.pattern.permute.xlu0 0
          %742 = vperm.xlu0 %741, %v724
          %v743 = vpop.permute.xlu0 %742
          %v745 = vmul.f32 %v710, %v728
          %v746 = vmul.f32 %v713, %v733
          %v747 = vmul.f32 %v716, %v738
          %v748 = vmul.f32 %v719, %v743
          %v749 = vld [vmem:[#allocation7] sm:$0xff]
          %v750 = vld [vmem:[#allocation7 + $0x8] sm:$0xff]
          %v751 = vld [vmem:[#allocation7 + $0x10] sm:$0xff]
          %v752 = vld [vmem:[#allocation7 + $0x18] sm:$0xff]
          %754 = vset.pattern.permute.xlu0 0
          %755 = vperm.xlu0 %754, %v749
          %v756 = vpop.permute.xlu0 %755
          %759 = vset.pattern.permute.xlu0 0
          %760 = vperm.xlu0 %759, %v750
          %v761 = vpop.permute.xlu0 %760
          %764 = vset.pattern.permute.xlu0 0
          %765 = vperm.xlu0 %764, %v751
          %v766 = vpop.permute.xlu0 %765
          %769 = vset.pattern.permute.xlu0 0
          %770 = vperm.xlu0 %769, %v752
          %v771 = vpop.permute.xlu0 %770
          %v773 = vadd.f32 %v745, %v756
          %v774 = vadd.f32 %v746, %v761
          %v775 = vadd.f32 %v747, %v766
          %v776 = vadd.f32 %v748, %v771
          %v777 = vmax.f32 %v773, 0.0
          %v778 = vmax.f32 %v774, 0.0
          %v779 = vmax.f32 %v775, 0.0
          %v780 = vmax.f32 %v776, 0.0
          %v781 = vld [vmem:[%s2] sm:$0xff]
          %v782 = vld [vmem:[%s2 + $0x8] sm:$0xff]
          %784 = vset.pattern.permute.xlu0 0
          %785 = vperm.xlu0 %784, %v234
          %v786 = vpop.permute.xlu0 %785
          %789 = vset.pattern.permute.xlu0 0
          %790 = vperm.xlu0 %789, %v235
          %v791 = vpop.permute.xlu0 %790
          %vm793 = vcmask 261120
          %v795 = vsel %vm793, %v781, 0
          %v798 = vsel %vm793, %v782, 0
          %800 = vmatpush.msra.mxu0 0.0
          %801 = vmatpush.msra.mxu0 0.0
          %802 = vmatpush.msra.mxu0 0.0
          %803 = vmatpush.msra.mxu0 0.0
          %804 = vmatpush.msra.mxu0 0.0
          %805 = vmatpush.msra.mxu0 0.0
          %806 = vmatpush.msra.mxu0 0.0
          %807 = vmatpush.msra.mxu0 0.0
          %808 = vmatpush.msra.mxu0 0.0
          %809 = vmatpush.msra.mxu0 0.0
          %810 = vmatpush.msra.mxu0 0.0
          %811 = vmatpush.msra.mxu0 0.0
          %812 = vmatpush.msra.mxu0 %v780
          %813 = vmatpush.msra.mxu0 %v779
          %814 = vmatpush.msra.mxu0 %v778
          %815 = vmatpush.msra.mxu0 %v777
          %816 = vmatmul.f32.gmra.mxu0 %v795
          %v817 = vpop.f32.mrf.mxu0
          %v818 = vadd.f32 %v786, %v817
          %819 = vmatmul.f32.gmra.mxu0 %v798
          %v820 = vpop.f32.mrf.mxu0
          %v821 = vadd.f32 %v791, %v820
          %822 = vdwg.mxu0
          %v823 = vlaneseq
          %v824 = vand.u32 %v823, 127
          %s825 = smul.u32 %s22, 128
          %v826 = vstv %s825
          %v827 = vadd.s32 %v826, %v824
          %vm828 = vcmp.lt.s32.totalorder %v827, 8
          %v829 = vsel %vm828, 1, 0
          %v830 = vcvt.s32.f32 %v829
          %v831 = vmul.f32 %v818, %v830
          %v832 = vmul.f32 %v821, %v830
          %v833 = vld [vmem:[#allocation4] sm:$0xff]
          %v834 = vld [vmem:[#allocation4 + $0x8] sm:$0xff]
          %v835 = vadd.f32 %v833, %v831
          %v836 = vadd.f32 %v834, %v832
          %837 = vst [vmem:[#allocation4] sm:$0xff] %v835
          %838 = vst [vmem:[#allocation4 + $0x8] sm:$0xff] %v836
          %v839 = vld [vmem:[#allocation5] sm:$0xff]
          %v840 = vld [vmem:[#allocation5 + $0x8] sm:$0xff]
          %v841 = vmul.f32 %v831, %v831
          %v842 = vmul.f32 %v832, %v832
          %v843 = vadd.f32 %v839, %v841
          %v844 = vadd.f32 %v840, %v842
          %845 = vst [vmem:[#allocation5] sm:$0xff] %v843
          %846 = vst [vmem:[#allocation5 + $0x8] sm:$0xff] %v844
        $region52: #{tpu_custom_call.1} parent=39 // pred_fallthru
          _
        %p847 = scmp.eq.s32.totalorder %s21, 2
        // Predicated region
        $region57: #{tpu_custom_call.1} parent=39 // pred_check
          %p848 = pneg %p847
        $region58: #{tpu_custom_call.1} parent=39 // pred_check_branch
          %850 = sbr.rel (%p848) target = $region60
        $region59: #{tpu_custom_call.1} parent=39 // pred_region
          %p851 = scmp.eq.s32.totalorder %s22, 0
          // Predicated region
          $region61: #{tpu_custom_call.1} parent=59 // pred_check
            %p852 = pneg %p851
          $region62: #{tpu_custom_call.1} parent=59 // pred_check_branch
            %854 = sbr.rel (%p852) target = $region64
          $region63: #{tpu_custom_call.1} parent=59 // pred_region
            %v855 = vld [vmem:[#allocation4] sm:$0xff]
            %v856 = vld [vmem:[#allocation4 + $0x8] sm:$0xff]
            %857 = vadd.xlane.f32.xlu0 %v855
            %v858 = vpop.xlane.xlu0 %857
            %859 = vadd.xlane.f32.xlu0 %v856
            %v860 = vpop.xlane.xlu0 %859
            %v861 = vmul.f32 %v858, 0.125
            %v862 = vmul.f32 %v860, 0.125
            %v863 = vld [vmem:[#allocation5] sm:$0xff]
            %v864 = vld [vmem:[#allocation5 + $0x8] sm:$0xff]
            %865 = vadd.xlane.f32.xlu0 %v863
            %v866 = vpop.xlane.xlu0 %865
            %867 = vadd.xlane.f32.xlu0 %v864
            %v868 = vpop.xlane.xlu0 %867
            %v869 = vmul.f32 %v866, 0.125
            %v870 = vmul.f32 %v868, 0.125
            %v871 = vmul.f32 %v861, %v861
            %v872 = vmul.f32 %v862, %v862
            %v873 = vsub.f32 %v869, %v871
            %v874 = vsub.f32 %v870, %v872
            %v875 = vmax.f32 %v873, 0.0
            %v876 = vmax.f32 %v874, 0.0
            %v877 = vadd.f32 %v875, 1e-05
            %v878 = vadd.f32 %v876, 1e-05
            %v879 = vrsqrt.pop %v877
            %v880 = vmul.f32 %v879, %v877
            %v881 = vmul.f32 %v880, %v879
            %v882 = vmul.f32 0.5, %v881
            %v883 = vsub.f32 1.5, %v882
            %v884 = vmul.f32 %v879, %v883
            %vm885 = vweird.f32 %v877
            %vm886 = vweird.f32 %v879
            %vm887 = vmor %vm885, %vm886
            %v888 = vsel %vm887, %v879, %v884
            %v889 = vrsqrt.pop %v878
            %v890 = vmul.f32 %v889, %v878
            %v891 = vmul.f32 %v890, %v889
            %v892 = vmul.f32 0.5, %v891
            %v893 = vsub.f32 1.5, %v892
            %v894 = vmul.f32 %v889, %v893
            %vm895 = vweird.f32 %v878
            %vm896 = vweird.f32 %v889
            %vm897 = vmor %vm895, %vm896
            %v898 = vsel %vm897, %v889, %v894
            %v899 = vmul.f32 %v234, %v888
            %v900 = vmul.f32 %v235, %v898
            %903 = vrot.lane.b32.xlu0 %v899, 127
            %v904 = vpop.permute.xlu0 %903
            %905 = vrot.lane.b32.xlu0 %v900, 127
            %v906 = vpop.permute.xlu0 %905
            %vm909 = vcmask 7168
            %910 = vst.msk [vmem:[#allocation8] sm:$0xff] %vm909, %v904
            %911 = vst.msk [vmem:[#allocation8 + $0x8] sm:$0xff] %vm909, %v906
            %v912 = vmul.f32 %v861, %v899
            %v913 = vmul.f32 %v862, %v900
            %916 = vrot.lane.b32.xlu0 %v912, 1
            %v917 = vpop.permute.xlu0 %916
            %918 = vrot.lane.b32.xlu0 %v913, 1
            %v919 = vpop.permute.xlu0 %918
            %v922 = vsub.f32 %v234, %v917
            %v923 = vsub.f32 %v235, %v919
            %926 = vrot.lane.b32.xlu0 %v922, 126
            %v927 = vpop.permute.xlu0 %926
            %928 = vrot.lane.b32.xlu0 %v923, 126
            %v929 = vpop.permute.xlu0 %928
            %932 = vst.msk [vmem:[#allocation9] sm:$0xff] %vm909, %v927
            %933 = vst.msk [vmem:[#allocation9 + $0x8] sm:$0xff] %vm909, %v929
          $region64: #{tpu_custom_call.1} parent=59 // pred_fallthru
            _
          %v934 = vld [vmem:[%s228] sm:$0xff]
          %v935 = vld [vmem:[%s228 + $0x8] sm:$0xff]
          %v936 = vld [vmem:[%s228 + $0x10] sm:$0xff]
          %v937 = vld [vmem:[%s228 + $0x18] sm:$0xff]
          %v938 = vld [vmem:[%s228 + $0x20] sm:$0xff]
          %v939 = vld [vmem:[%s228 + $0x28] sm:$0xff]
          %v940 = vld [vmem:[%s228 + $0x30] sm:$0xff]
          %v941 = vld [vmem:[%s228 + $0x38] sm:$0xff]
          %v942 = vld [vmem:[%s228 + $0x40] sm:$0xff]
          %v943 = vld [vmem:[%s228 + $0x48] sm:$0xff]
          %v944 = vld [vmem:[%s228 + $0x50] sm:$0xff]
          %v945 = vld [vmem:[%s228 + $0x58] sm:$0xff]
          %v946 = vld [vmem:[%s228 + $0x60] sm:$0xff]
          %v947 = vld [vmem:[%s228 + $0x68] sm:$0xff]
          %v948 = vld [vmem:[%s228 + $0x70] sm:$0xff]
          %v949 = vld [vmem:[%s228 + $0x78] sm:$0xff]
          %v950 = vld [vmem:[%s1] sm:$0xff]
          %v951 = vld [vmem:[%s1 + $0x8] sm:$0xff]
          %v952 = vld [vmem:[%s1 + $0x10] sm:$0xff]
          %v953 = vld [vmem:[%s1 + $0x18] sm:$0xff]
          %955 = vset.pattern.permute.xlu0 0
          %956 = vperm.xlu0 %955, %v230
          %v957 = vpop.permute.xlu0 %956
          %960 = vset.pattern.permute.xlu0 0
          %961 = vperm.xlu0 %960, %v231
          %v962 = vpop.permute.xlu0 %961
          %965 = vset.pattern.permute.xlu0 0
          %966 = vperm.xlu0 %965, %v232
          %v967 = vpop.permute.xlu0 %966
          %970 = vset.pattern.permute.xlu0 0
          %971 = vperm.xlu0 %970, %v233
          %v972 = vpop.permute.xlu0 %971
          %vm974 = vcmask 523264
          %v976 = vsel %vm974, %v950, 0
          %v979 = vsel %vm974, %v951, 0
          %v982 = vsel %vm974, %v952, 0
          %v985 = vsel %vm974, %v953, 0
          %v988 = vsel %vm974, %v934, 0
          %v991 = vsel %vm974, %v935, 0
          %v994 = vsel %vm974, %v936, 0
          %v997 = vsel %vm974, %v937, 0
          %v1000 = vsel %vm974, %v938, 0
          %v1003 = vsel %vm974, %v939, 0
          %v1006 = vsel %vm974, %v940, 0
          %v1009 = vsel %vm974, %v941, 0
          %v1012 = vsel %vm974, %v942, 0
          %v1015 = vsel %vm974, %v943, 0
          %v1018 = vsel %vm974, %v944, 0
          %v1021 = vsel %vm974, %v945, 0
          %v1024 = vsel %vm974, %v946, 0
          %v1027 = vsel %vm974, %v947, 0
          %v1030 = vsel %vm974, %v948, 0
          %v1033 = vsel %vm974, %v949, 0
          %1035 = vmatpush.xpose.msra.mxu0 %v1033
          %1036 = vmatpush.xpose.msra.mxu0 %v1030
          %1037 = vmatpush.xpose.msra.mxu0 %v1027
          %1038 = vmatpush.xpose.msra.mxu0 %v1024
          %1039 = vmatpush.xpose.msra.mxu0 %v1021
          %1040 = vmatpush.xpose.msra.mxu0 %v1018
          %1041 = vmatpush.xpose.msra.mxu0 %v1015
          %1042 = vmatpush.xpose.msra.mxu0 %v1012
          %1043 = vmatpush.xpose.msra.mxu0 %v1009
          %1044 = vmatpush.xpose.msra.mxu0 %v1006
          %1045 = vmatpush.xpose.msra.mxu0 %v1003
          %1046 = vmatpush.xpose.msra.mxu0 %v1000
          %1047 = vmatpush.xpose.msra.mxu0 %v997
          %1048 = vmatpush.xpose.msra.mxu0 %v994
          %1049 = vmatpush.xpose.msra.mxu0 %v991
          %1050 = vmatpush.xpose.msra.mxu0 %v988
          %1051 = vmatmul.f32.gmra.mxu0 %v976
          %v1052 = vpop.f32.mrf.mxu0
          %v1053 = vadd.f32 %v957, %v1052
          %1054 = vmatmul.f32.gmra.mxu0 %v979
          %v1055 = vpop.f32.mrf.mxu0
          %v1056 = vadd.f32 %v962, %v1055
          %1057 = vmatmul.f32.gmra.mxu0 %v982
          %v1058 = vpop.f32.mrf.mxu0
          %v1059 = vadd.f32 %v967, %v1058
          %1060 = vmatmul.f32.gmra.mxu0 %v985
          %v1061 = vpop.f32.mrf.mxu0
          %v1062 = vadd.f32 %v972, %v1061
          %1063 = vdwg.mxu0
          %v1064 = vld [vmem:[#allocation6] sm:$0xff]
          %v1065 = vld [vmem:[#allocation6 + $0x8] sm:$0xff]
          %v1066 = vld [vmem:[#allocation6 + $0x10] sm:$0xff]
          %v1067 = vld [vmem:[#allocation6 + $0x18] sm:$0xff]
          %1069 = vset.pattern.permute.xlu0 0
          %1070 = vperm.xlu0 %1069, %v1064
          %v1071 = vpop.permute.xlu0 %1070
          %1074 = vset.pattern.permute.xlu0 0
          %1075 = vperm.xlu0 %1074, %v1065
          %v1076 = vpop.permute.xlu0 %1075
          %1079 = vset.pattern.permute.xlu0 0
          %1080 = vperm.xlu0 %1079, %v1066
          %v1081 = vpop.permute.xlu0 %1080
          %1084 = vset.pattern.permute.xlu0 0
          %1085 = vperm.xlu0 %1084, %v1067
          %v1086 = vpop.permute.xlu0 %1085
          %v1088 = vmul.f32 %v1053, %v1071
          %v1089 = vmul.f32 %v1056, %v1076
          %v1090 = vmul.f32 %v1059, %v1081
          %v1091 = vmul.f32 %v1062, %v1086
          %v1092 = vld [vmem:[#allocation7] sm:$0xff]
          %v1093 = vld [vmem:[#allocation7 + $0x8] sm:$0xff]
          %v1094 = vld [vmem:[#allocation7 + $0x10] sm:$0xff]
          %v1095 = vld [vmem:[#allocation7 + $0x18] sm:$0xff]
          %1097 = vset.pattern.permute.xlu0 0
          %1098 = vperm.xlu0 %1097, %v1092
          %v1099 = vpop.permute.xlu0 %1098
          %1102 = vset.pattern.permute.xlu0 0
          %1103 = vperm.xlu0 %1102, %v1093
          %v1104 = vpop.permute.xlu0 %1103
          %1107 = vset.pattern.permute.xlu0 0
          %1108 = vperm.xlu0 %1107, %v1094
          %v1109 = vpop.permute.xlu0 %1108
          %1112 = vset.pattern.permute.xlu0 0
          %1113 = vperm.xlu0 %1112, %v1095
          %v1114 = vpop.permute.xlu0 %1113
          %v1116 = vadd.f32 %v1088, %v1099
          %v1117 = vadd.f32 %v1089, %v1104
          %v1118 = vadd.f32 %v1090, %v1109
          %v1119 = vadd.f32 %v1091, %v1114
          %v1120 = vmax.f32 %v1116, 0.0
          %v1121 = vmax.f32 %v1117, 0.0
          %v1122 = vmax.f32 %v1118, 0.0
          %v1123 = vmax.f32 %v1119, 0.0
          %v1124 = vld [vmem:[%s2] sm:$0xff]
          %v1125 = vld [vmem:[%s2 + $0x8] sm:$0xff]
          %1127 = vset.pattern.permute.xlu0 0
          %1128 = vperm.xlu0 %1127, %v234
          %v1129 = vpop.permute.xlu0 %1128
          %1132 = vset.pattern.permute.xlu0 0
          %1133 = vperm.xlu0 %1132, %v235
          %v1134 = vpop.permute.xlu0 %1133
          %vm1136 = vcmask 261120
          %v1138 = vsel %vm1136, %v1124, 0
          %v1141 = vsel %vm1136, %v1125, 0
          %1143 = vmatpush.msra.mxu0 0.0
          %1144 = vmatpush.msra.mxu0 0.0
          %1145 = vmatpush.msra.mxu0 0.0
          %1146 = vmatpush.msra.mxu0 0.0
          %1147 = vmatpush.msra.mxu0 0.0
          %1148 = vmatpush.msra.mxu0 0.0
          %1149 = vmatpush.msra.mxu0 0.0
          %1150 = vmatpush.msra.mxu0 0.0
          %1151 = vmatpush.msra.mxu0 0.0
          %1152 = vmatpush.msra.mxu0 0.0
          %1153 = vmatpush.msra.mxu0 0.0
          %1154 = vmatpush.msra.mxu0 0.0
          %1155 = vmatpush.msra.mxu0 %v1123
          %1156 = vmatpush.msra.mxu0 %v1122
          %1157 = vmatpush.msra.mxu0 %v1121
          %1158 = vmatpush.msra.mxu0 %v1120
          %1159 = vmatmul.f32.gmra.mxu0 %v1138
          %v1160 = vpop.f32.mrf.mxu0
          %v1161 = vadd.f32 %v1129, %v1160
          %1162 = vmatmul.f32.gmra.mxu0 %v1141
          %v1163 = vpop.f32.mrf.mxu0
          %v1164 = vadd.f32 %v1134, %v1163
          %1165 = vdwg.mxu0
          %v1166 = vld [vmem:[#allocation8] sm:$0xff]
          %v1167 = vld [vmem:[#allocation8 + $0x8] sm:$0xff]
          %1169 = vset.pattern.permute.xlu0 0
          %1170 = vperm.xlu0 %1169, %v1166
          %v1171 = vpop.permute.xlu0 %1170
          %1174 = vset.pattern.permute.xlu0 0
          %1175 = vperm.xlu0 %1174, %v1167
          %v1176 = vpop.permute.xlu0 %1175
          %v1178 = vmul.f32 %v1161, %v1171
          %v1179 = vmul.f32 %v1164, %v1176
          %v1180 = vld [vmem:[#allocation9] sm:$0xff]
          %v1181 = vld [vmem:[#allocation9 + $0x8] sm:$0xff]
          %1183 = vset.pattern.permute.xlu0 0
          %1184 = vperm.xlu0 %1183, %v1180
          %v1185 = vpop.permute.xlu0 %1184
          %1188 = vset.pattern.permute.xlu0 0
          %1189 = vperm.xlu0 %1188, %v1181
          %v1190 = vpop.permute.xlu0 %1189
          %v1192 = vadd.f32 %v1178, %v1185
          %v1193 = vadd.f32 %v1179, %v1190
          %v1194 = vmax.f32 %v1192, 0.0
          %v1195 = vmax.f32 %v1193, 0.0
          %1196 = vset.pattern.permute.xlu0 3
          %1197 = vperm.xlu0 %1196, %v234
          %v1198 = vpop.permute.xlu0 %1197
          %1200 = vset.pattern.permute.xlu0 3
          %1201 = vperm.xlu0 %1200, %v235
          %v1202 = vpop.permute.xlu0 %1201
          %v1204 = vmul.f32 %v1194, %v1198
          %v1205 = vmul.f32 %v1195, %v1202
          %v1206 = vadd.f32 %v1204, %v1205
          %v1207 = vrot.slane %v1206, 4
          %v1208 = vadd.f32 %v1206, %v1207
          %v1209 = vrot.slane %v1208, 2
          %v1210 = vadd.f32 %v1208, %v1209
          %v1211 = vrot.slane %v1210, 1
          %v1212 = vadd.f32 %v1210, %v1211
          %1213 = vset.pattern.permute.xlu0 4
          %1214 = vperm.xlu0 %1213, %v234
          %v1215 = vpop.permute.xlu0 %1214
          %v1217 = vadd.f32 %v1212, %v1215
          %v1218 = vsub.f32 0.0, %v1217
          %v1219 = vmul.f32 %v1218, 1.442695
          %v1220 = vpow.pop %v1219
          %v1221 = vadd.f32 %v1220, 1.0
          %v1222 = vrcp.pop %v1221
          %v1223 = vmul.f32 %v1221, %v1222
          %v1224 = vsub.f32 1.0, %v1223
          %v1225 = vmul.f32 %v1222, %v1224
          %v1226 = vadd.f32 %v1222, %v1225
          %vm1227 = vweird.f32 %v1221
          %vm1228 = vweird.f32 %v1222
          %vm1229 = vmor %vm1227, %vm1228
          %v1230 = vsel %vm1229, %v1222, %v1226
          %v1231 = vand.u32 2147483647, %v1221
          %vm1232 = vcmp.eq.f32.partialorder %v1231, 8.507059e+37
          %v1233 = vand.u32 %v1221, 2147483648
          %v1234 = vor.u32 1.1754944e-38, %v1233
          %v1235 = vsel %vm1232, %v1234, %v1230
          %1236 = vst [vmem:[#allocation10] sm:$0x1] %v1235
        $region60: #{tpu_custom_call.1} parent=39 // pred_fallthru
          _
        // Predicated region
        $region65: #{tpu_custom_call.1} parent=39 // pred_check
          %p1237 = pneg %p157
        $region66: #{tpu_custom_call.1} parent=39 // pred_check_branch
          %1239 = sbr.rel (%p1237) target = $region68
        $region67: #{tpu_custom_call.1} parent=39 // pred_region
          %1241 = vsyncadd [#allocation11], 0
          %s1242 = scalar_lea.hbm %s5, %s22
          %s1244 = sshll.u32 [#allocation10], 4
          %s1245 = int_to_ptr.vmem [resolvable:$true] %s1244
          %s1246 = sshll.u32 %s1242, 4
          %s1247 = int_to_ptr.hbm [resolvable:$true] %s1246
          %1249 = dma.vmem_to_hbm [thread:$0]  %s1245, 16, %s1247, [#allocation11]
        $region68: #{tpu_custom_call.1} parent=39 // pred_fallthru
          _
        // Predicated region
        $region69: #{tpu_custom_call.1} parent=39 // pred_check
          %p1250 = pneg %p157
        $region70: #{tpu_custom_call.1} parent=39 // pred_check_branch
          %1252 = sbr.rel (%p1250) target = $region72
        $region71: #{tpu_custom_call.1} parent=39 // pred_region
          %1254 = dma.done [#allocation11], 16
        $region72: #{tpu_custom_call.1} parent=39 // pred_fallthru
          _
      $region40: #{tpu_custom_call.1} parent=5 // pred_fallthru
        _
      %p1255 = scmp.le.s32.totalorder 2, %s12
      // Predicated region
      $region73: #{tpu_custom_call.1} parent=5 // pred_check
        %p1256 = pneg %p1255
      $region74: #{tpu_custom_call.1} parent=5 // pred_check_branch
        %1258 = sbr.rel (%p1256) target = $region76
      $region75: #{tpu_custom_call.1} parent=5 // pred_region
        %s1259 = ssub.s32 %s12, 2
      $region76: #{tpu_custom_call.1} parent=5 // pred_fallthru
        _
    $region6: #{tpu_custom_call.1} parent=1 // loop_footer
      %s16 = sadd.s32 1, %s12
    $region7: #{tpu_custom_call.1} parent=1 // loop_footer_branch
      %11 = sbr.rel target = $region3
    $region8: #{tpu_custom_call.1} parent=1 // loop_exit
      _
    %1260 = vsyncpa [#allocation11], 1
    %s1261 = scalar_lea.sflag [#allocation11], 1
    %1262 = vsyncpa %s1261, 1

</llo_original>
